<compile_context>
chip_gen: v7x
topology: tpu7x:2x2x1
jax: 0.10.0
libtpu: 0.0.40
codegen_flags: <defaults>
</compile_context>

<pallas_src>
import functools

import jax
import jax.numpy as jnp
from jax.experimental import pallas as pl
from jax.experimental.pallas import tpu as pltpu

BN_EPS = 1e-5  # nn.BatchNorm2d default


# ----------------------------- Pallas kernels ------------------------------

def _conv_block_kernel(body_ref, top_ref, bot_ref, mean_ref, inv_ref,
                       w_ref, b_ref, o_ref, sum_ref, ssq_ref, *, apply_bn):
    # body_ref: (1, TH, W, Ci)   rows of the previous layer's raw conv output (or input)
    # top_ref/bot_ref: (1, 1, W, Ci) halo rows (clamped index map; zero-masked at edges)
    # mean_ref/inv_ref: (1, Ci)  BN stats of the producer (ignored if apply_bn=False)
    # w_ref: (9*Ci, Co) bf16 tap-major 3x3 weights, b_ref: (1, Co) f32
    # o_ref: (1, TH, W, Co) bf16 raw conv output (pre-BN) of THIS layer
    # sum_ref/ssq_ref: (1, 1, Co) per-sample resident accumulators for THIS layer's BN
    th, W, Ci = body_ref.shape[1], body_ref.shape[2], body_ref.shape[3]
    Co = o_ref.shape[3]
    h_idx = pl.program_id(1)
    n_h = pl.num_programs(1)

    def norm(t):
        # Fused BN (gamma=1, beta=0) + ReLU of the *previous* layer in f32, then cast
        # to bf16 BEFORE the im2col data movement so the copy-heavy section runs on
        # packed vregs (the matmul operands are bf16 anyway).
        t = t.astype(jnp.float32)
        if apply_bn:
            t = jnp.maximum((t - mean_ref[...]) * inv_ref[...], 0.0)
        return t.astype(jnp.bfloat16)

    # Zero out-of-image halo rows AFTER normalization (padding applies to the
    # normalized activation, as in the original module).
    top_keep = jnp.where(h_idx > 0, 1.0, 0.0).astype(jnp.bfloat16)
    bot_keep = jnp.where(h_idx < n_h - 1, 1.0, 0.0).astype(jnp.bfloat16)
    x = jnp.concatenate([norm(top_ref[0]) * top_keep,
                         norm(body_ref[0]),
                         norm(bot_ref[0]) * bot_keep], axis=0)            # (TH+2, W, Ci) bf16

    zcol = jnp.zeros((th + 2, 1, Ci), jnp.bfloat16)
    xp = jnp.concatenate([zcol, x, zcol], axis=1)                         # (TH+2, W+2, Ci)

    # im2col once per tile -> single K = 9*Ci matmul on the MXU (bf16 in / f32 acc).
    # TODO(synk): for Ci not a multiple of 128, padding each tap slot to 128 lanes
    # would remove the lane-shuffles in this concat; verify VALU/XLU is the binding
    # slot in a bundle dump before spending the extra (idle) MXU K columns.
    cols = jnp.concatenate(
        [xp[dy:dy + th, dx:dx + W, :] for dy in range(3) for dx in range(3)],
        axis=-1).reshape(th * W, 9 * Ci)                                  # bf16

    y = jnp.dot(cols, w_ref[...], preferred_element_type=jnp.float32) + b_ref[...]

    # BN statistics for THIS layer's output: per-sample (n) accumulators, reduced over
    # n in the wrapper, so the "parallel" batch axis stays race-free on v7x megacore.
    @pl.when(h_idx == 0)
    def _init():
        sum_ref[...] = jnp.zeros_like(sum_ref)
        ssq_ref[...] = jnp.zeros_like(ssq_ref)

    sum_ref[0] += jnp.sum(y, axis=0, keepdims=True)
    ssq_ref[0] += jnp.sum(y * y, axis=0, keepdims=True)

    # TODO(synk): for Co < 128 this store is lane-masked (vst.msk); a lane-dense
    # (th, W*Co) layout for the intermediate would help the single v5e store slot but
    # needs a minor-dim-merging reshape/relayout whose Mosaic lowering is unverified
    # here, so it is deferred (Co = 4*filter_size >= 128 for the default module).
    o_ref[0] = y.reshape(th, W, Co).astype(o_ref.dtype)


def _head_kernel(x_ref, mean_ref, inv_ref, w_ref, b_ref, o_ref):
    # Fused BN+ReLU of block 3, then 1x1 conv (channel matmul).  Columns >= half get
    # 2*tanh applied in-place; the chunk(2) split happens in the wrapper.
    xn = jnp.maximum((x_ref[...].astype(jnp.float32) - mean_ref[...]) * inv_ref[...], 0.0)
    y = jnp.dot(xn.astype(jnp.bfloat16), w_ref[...],
                preferred_element_type=jnp.float32) + b_ref[...]
    half = y.shape[-1] // 2
    col = jax.lax.broadcasted_iota(jnp.int32, y.shape, 1)
    o_ref[...] = jnp.where(col < half, y, 2.0 * jnp.tanh(y))


# ------------------------------ pallas_call glue ----------------------------

def _ceil_to(x, m):
    return -(-x // m) * m


@functools.lru_cache(maxsize=None)
def _vmem_budget():
    # Generation-aware budget: 75% of physical VMEM (v5e/v6e: 128 MiB, v7x: 64 MiB),
    # leaving headroom for Mosaic internal scratch.  Falls back to the smallest
    # generation (64 MiB) if the query is unavailable.
    cap = 64 * 2**20
    try:
        info = pltpu.get_tpu_info()
        got = int(getattr(info, "vmem_capacity_bytes", 0))
        if got > 0:
            cap = got
    except Exception:
        pass
    return int(min(cap * 3 // 4, 112 * 2**20))


def _conv_vmem_bytes(th, W, Ci, Co, in_bytes):
    # Rough per-step VMEM footprint of one conv tile: double-buffered operands
    # (lane dims padded to 128) + single-copy in-kernel temporaries, with a 1.3x fudge.
    ci_p = _ceil_to(Ci, 128)
    co_p = _ceil_to(Co, 128)
    blk_in = th * W * ci_p * in_bytes
    halo = 2 * W * ci_p * in_bytes
    blk_out = th * W * co_p * 2                       # bf16 intermediate
    wts = 9 * Ci * co_p * 2 + 3 * co_p * 4            # w9 (bf16) + bias/mean/inv
    stats = 2 * 8 * co_p * 4
    xp = (th + 2) * (W + 2) * ci_p * 2                # padded bf16 activation
    cols = th * W * _ceil_to(9 * Ci, 128) * 2         # im2col matrix (bf16)
    acc = th * W * co_p * 4                           # f32 matmul result
    dbuf = 2 * (blk_in + halo + blk_out + wts + stats)
    return int(1.3 * (dbuf + xp + cols + acc))


def _pick_th(H, W, Ci, Co, in_bytes, budget):
    # Largest row tile that divides H and fits the VMEM budget, so th*W >= 256
    # whenever possible (fills the 256-wide MXU on v6e/v7x and amortises the halo
    # re-read and per-step grid overhead).
    cands = [t for t in (128, 64, 32, 16, 8, 4, 2, 1) if H % t == 0]
    for t in cands:
        if _conv_vmem_bytes(t, W, Ci, Co, in_bytes) <= budget:
            return t
    return cands[-1]


def _row_tile(R):
    for t in (4096, 2048, 1024, 512, 256, 128, 64, 32, 16, 8):
        if R % t == 0:
            return t
    return R


def _conv_block(x, mean, inv, w, b, *, apply_bn):
    # x: (N, H, W, Ci).  Returns the raw conv output (N, H, W, Co) bf16 plus per-sample
    # channel sum / sum-of-squares (N, 1, Co) for this layer's train-mode BN.
    N, H, W, Ci = x.shape
    Co = w.shape[-1]
    budget = _vmem_budget()
    in_bytes = jnp.dtype(x.dtype).itemsize
    th = _pick_th(H, W, Ci, Co, in_bytes, budget)
    n_h = H // th
    if mean is None:
        mean = jnp.zeros((1, Ci), jnp.float32)
        inv = jnp.ones((1, Ci), jnp.float32)
    w9 = w.reshape(9 * Ci, Co).astype(jnp.bfloat16)

    kernel = functools.partial(_conv_block_kernel, apply_bn=apply_bn)
    # TODO(synk): constant-index operands (w9/b/mean/inv) could use
    # pipeline_mode=pl.Buffered(1) to drop one VMEM copy on v7x; deferred pending
    # verification that single-buffering is accepted by this Pallas version.
    return pl.pallas_call(
        kernel,
        out_shape=(jax.ShapeDtypeStruct((N, H, W, Co), jnp.bfloat16),
                   jax.ShapeDtypeStruct((N, 1, Co), jnp.float32),
                   jax.ShapeDtypeStruct((N, 1, Co), jnp.float32)),
        grid=(N, n_h),
        in_specs=[
            pl.BlockSpec((1, th, W, Ci), lambda n, h: (n, h, 0, 0)),
            pl.BlockSpec((1, 1, W, Ci),
                         lambda n, h: (n, jnp.maximum(h * th - 1, 0), 0, 0)),
            pl.BlockSpec((1, 1, W, Ci),
                         lambda n, h: (n, jnp.minimum((h + 1) * th, H - 1), 0, 0)),
            pl.BlockSpec((1, Ci), lambda n, h: (0, 0)),
            pl.BlockSpec((1, Ci), lambda n, h: (0, 0)),
            pl.BlockSpec((9 * Ci, Co), lambda n, h: (0, 0)),
            pl.BlockSpec((1, Co), lambda n, h: (0, 0)),
        ],
        out_specs=(
            pl.BlockSpec((1, th, W, Co), lambda n, h: (n, h, 0, 0)),
            pl.BlockSpec((1, 1, Co), lambda n, h: (n, 0, 0)),   # per-n accumulator
            pl.BlockSpec((1, 1, Co), lambda n, h: (n, 0, 0)),   # per-n accumulator
        ),
        compiler_params=pltpu.CompilerParams(
            # batch axis "parallel" -> v7x's 2 TensorCores split the work; the
            # reduction (h) axis stays "arbitrary" and innermost.
            dimension_semantics=("parallel", "arbitrary"),
            vmem_limit_bytes=budget),
    )(x, x, x, mean, inv, w9, b)


def _finalize_stats(s, q, count):
    # Train-mode BatchNorm2d stats (biased variance over N*H*W).  Per-sample partial
    # sums are reduced here; E[x^2]-E[x]^2 is clamped at 0 before rsqrt.
    s = jnp.sum(s, axis=0)          # (1, Co)
    q = jnp.sum(q, axis=0)
    mean = s / count
    var = jnp.maximum(q / count - mean * mean, 0.0)
    inv = jax.lax.rsqrt(var + BN_EPS)
    return mean, inv


def _head(x_flat, mean, inv, w, b):
    R, C = x_flat.shape
    Cout = w.shape[-1]
    tr = _row_tile(R)
    return pl.pallas_call(
        _head_kernel,
        out_shape=jax.ShapeDtypeStruct((R, Cout), jnp.float32),
        grid=(R // tr,),
        in_specs=[
            pl.BlockSpec((tr, C), lambda r: (r, 0)),
            pl.BlockSpec((1, C), lambda r: (0, 0)),
            pl.BlockSpec((1, C), lambda r: (0, 0)),
            pl.BlockSpec((C, Cout), lambda r: (0, 0)),
            pl.BlockSpec((1, Cout), lambda r: (0, 0)),
        ],
        out_specs=pl.BlockSpec((tr, Cout), lambda r: (r, 0)),
        compiler_params=pltpu.CompilerParams(
            dimension_semantics=("parallel",), vmem_limit_bytes=_vmem_budget()),
    )(x_flat, mean, inv, w.astype(jnp.bfloat16), b)


def cond_prior_forward(x_nchw, params, return_aux=False):
    x = jnp.transpose(x_nchw.astype(jnp.float32), (0, 2, 3, 1))  # NCHW -> NHWC
    N, H, W, _ = x.shape
    cnt = N * H * W

    y1, s1, q1 = _conv_block(x, None, None, params["w1"], params["b1"], apply_bn=False)
    m1, i1 = _finalize_stats(s1, q1, cnt)
    y2, s2, q2 = _conv_block(y1, m1, i1, params["w2"], params["b2"], apply_bn=True)
    m2, i2 = _finalize_stats(s2, q2, cnt)
    y3, s3, q3 = _conv_block(y2, m2, i2, params["w3"], params["b3"], apply_bn=True)
    m3, i3 = _finalize_stats(s3, q3, cnt)

    out = _head(y3.reshape(cnt, -1), m3, i3, params["w4"], params["b4"])
    half = out.shape[-1] // 2

    def to_nchw(t):
        return jnp.transpose(t.reshape(N, H, W, half), (0, 3, 1, 2))

    mu, log_sd = to_nchw(out[:, :half]), to_nchw(out[:, half:])
    if return_aux:
        return mu, log_sd, (y3, m3, i3)
    return mu, log_sd


# --------------------------- parameters & reference -------------------------

def init_params(key, in_ch, out_ch, fs):
    # Conv weights ~ N(0, 0.05), biases zero; BN gamma=1/beta=0 (identity affine);
    # the last 1x1 conv weight AND bias are explicitly zeroed, as in the module.
    k1, k2, k3 = jax.random.split(key, 3)

    def w3(k, ci, co):
        return 0.05 * jax.random.normal(k, (3, 3, ci, co), jnp.float32)

    return {
        "w1": w3(k1, in_ch, fs),      "b1": jnp.zeros((1, fs), jnp.float32),
        "w2": w3(k2, fs, 2 * fs),     "b2": jnp.zeros((1, 2 * fs), jnp.float32),
        "w3": w3(k3, 2 * fs, 4 * fs), "b3": jnp.zeros((1, 4 * fs), jnp.float32),
        "w4": jnp.zeros((4 * fs, out_ch), jnp.float32),
        "b4": jnp.zeros((1, out_ch), jnp.float32),
    }


def ref_forward(x_nchw, params):
    # Pure-jnp reference mirroring the kernel's precision policy (bf16 matmul operands,
    # f32 accumulation, bf16 HBM round-trip of the raw conv output, BN stats from the
    # unrounded f32 values) so tolerances can stay reasonably tight.
    bf = lambda t: t.astype(jnp.bfloat16)
    x = jnp.transpose(x_nchw.astype(jnp.float32), (0, 2, 3, 1))
    N, H, W, _ = x.shape

    def conv3x3_ref(xx, w, b):
        xp = jnp.pad(xx, ((0, 0), (1, 1), (1, 1), (0, 0)))
        acc = 0.0
        for dy in range(3):
            for dx in range(3):
                acc = acc + jnp.einsum("nhwc,cd->nhwd",
                                       bf(xp[:, dy:dy + H, dx:dx + W, :]),
                                       bf(w[dy, dx]),
                                       preferred_element_type=jnp.float32)
        return acc + b[0]

    def block_ref(xx, w, b):
        y = conv3x3_ref(xx, w, b)
        mean = jnp.mean(y, axis=(0, 1, 2), keepdims=True)
        var = jnp.mean((y - mean) ** 2, axis=(0, 1, 2), keepdims=True)
        inv = jax.lax.rsqrt(var + BN_EPS)
        y_hbm = bf(y).astype(jnp.float32)           # bf16 HBM round-trip of y
        return jnp.maximum((y_hbm - mean) * inv, 0.0)

    h = block_ref(x, params["w1"], params["b1"])
    h = block_ref(h, params["w2"], params["b2"])
    h = block_ref(h, params["w3"], params["b3"])
    y = jnp.einsum("nhwc,cd->nhwd", bf(h), bf(params["w4"]),
                   preferred_element_type=jnp.float32) + params["b4"][0]
    half = y.shape[-1] // 2
    to_nchw = lambda t: jnp.transpose(t, (0, 3, 1, 2))
    return to_nchw(y[..., :half]), to_nchw(2.0 * jnp.tanh(y[..., half:])), h


# ----------------------------------- main -----------------------------------

if __name__ == "__main__":
    key = jax.random.PRNGKey(0)
    N, Cin, H, W = 2, 4, 16, 16
    Cout, FS = 8, 32  # small filter_size for a quick synthetic run

    kx, kp, kw = jax.random.split(key, 3)
    x = jax.random.normal(kx, (N, Cin, H, W), jnp.float32)
    params = init_params(kp, Cin, Cout, FS)

    mu, log_sd, aux = cond_prior_forward(x, params, return_aux=True)
    jax.block_until_ready((mu, log_sd))
    mu_ref, ls_ref, hid_ref = ref_forward(x, params)

    # Reconstruct the post-BN/ReLU hidden of block 3 from the kernel outputs (the
    # fused kernels never materialize it) and compare against the reference.
    y3, m3, i3 = aux
    hid = jnp.maximum((y3.astype(jnp.float32) - m3) * i3, 0.0)

    assert mu.shape == (N, Cout // 2, H, W), mu.shape
    assert log_sd.shape == (N, Cout // 2, H, W), log_sd.shape
    # bf16 intermediates in HBM -> tolerances a bit looser than the f32 version.
    assert jnp.allclose(hid, hid_ref, atol=2e-2, rtol=2e-2)
    # Last conv is zero-initialized (as in the module) -> mu == 0, log_sd == 2*tanh(0) == 0.
    assert jnp.allclose(mu, mu_ref, atol=1e-4)
    assert jnp.allclose(log_sd, ls_ref, atol=1e-4)

    # Exercise the head matmul / tanh path with a non-zero final 1x1 conv as well.
    p2 = dict(params)
    p2["w4"] = 0.05 * jax.random.normal(kw, params["w4"].shape, jnp.float32)
    p2["b4"] = 0.01 * jnp.ones_like(params["b4"])
    mu2, ls2 = cond_prior_forward(x, p2)
    jax.block_until_ready((mu2, ls2))
    mu2_ref, ls2_ref, _ = ref_forward(x, p2)
    assert jnp.allclose(mu2, mu2_ref, atol=2e-2, rtol=2e-2)
    assert jnp.allclose(ls2, ls2_ref, atol=2e-2, rtol=2e-2)

    print("KERNEL_OK")
</pallas_src>

<mosaic_0001>
module attributes {stable_mosaic.version = 11 : i64} {
  func.func @_conv_block_kernel(%arg0: i32, %arg1: i32, %arg2: memref<1x16x16x4xf32, #tpu.memory_space<vmem>>, %arg3: memref<1x1x16x4xf32, #tpu.memory_space<vmem>>, %arg4: memref<1x1x16x4xf32, #tpu.memory_space<vmem>>, %arg5: memref<1x4xf32, #tpu.memory_space<vmem>>, %arg6: memref<1x4xf32, #tpu.memory_space<vmem>>, %arg7: memref<36x32xbf16, #tpu.memory_space<vmem>>, %arg8: memref<1x32xf32, #tpu.memory_space<vmem>>, %arg9: memref<1x16x16x32xbf16, #tpu.memory_space<vmem>>, %arg10: memref<1x1x32xf32, #tpu.memory_space<vmem>>, %arg11: memref<1x1x32xf32, #tpu.memory_space<vmem>>) attributes {dimension_semantics = [#tpu.dimension_semantics<parallel>, #tpu.dimension_semantics<arbitrary>], iteration_bounds = array<i64: 2, 1>, scalar_prefetch = 0 : i64, scratch_operands = 0 : i64, tpu.core_type = #tpu.core_type<tc>, window_params = [{transform_indices = @transform_0, window_bounds = array<i64: 1, 16, 16, 4>}, {transform_indices = @transform_1, window_bounds = array<i64: 1, 1, 16, 4>}, {transform_indices = @transform_2, window_bounds = array<i64: 1, 1, 16, 4>}, {pipeline_mode = #tpu.pipeline_mode<synchronous>, transform_indices = @transform_3, window_bounds = array<i64: 1, 4>}, {pipeline_mode = #tpu.pipeline_mode<synchronous>, transform_indices = @transform_4, window_bounds = array<i64: 1, 4>}, {pipeline_mode = #tpu.pipeline_mode<synchronous>, transform_indices = @transform_5, window_bounds = array<i64: 36, 32>}, {pipeline_mode = #tpu.pipeline_mode<synchronous>, transform_indices = @transform_6, window_bounds = array<i64: 1, 32>}, {transform_indices = @transform_7, window_bounds = array<i64: 1, 16, 16, 32>}, {transform_indices = @transform_8, window_bounds = array<i64: 1, 1, 32>}, {transform_indices = @transform_9, window_bounds = array<i64: 1, 1, 32>}]} {
    %c0_i32 = arith.constant 0 : i32
    %0 = arith.cmpi sgt, %arg1, %c0_i32 : i32
    %cst = arith.constant 1.000000e+00 : f32
    %cst_0 = arith.constant 0.000000e+00 : f32
    %1 = arith.select %0, %cst, %cst_0 : f32
    %2 = arith.truncf %1 : f32 to bf16
    %c0_i32_1 = arith.constant 0 : i32
    %3 = arith.cmpi slt, %arg1, %c0_i32_1 : i32
    %cst_2 = arith.constant 1.000000e+00 : f32
    %cst_3 = arith.constant 0.000000e+00 : f32
    %4 = arith.select %3, %cst_2, %cst_3 : f32
    %5 = arith.truncf %4 : f32 to bf16
    %c0 = arith.constant 0 : index
    %c0_4 = arith.constant 0 : index
    %c0_5 = arith.constant 0 : index
    %c0_6 = arith.constant 0 : index
    %6 = vector.load %arg3[%c0, %c0_4, %c0_5, %c0_6] : memref<1x1x16x4xf32, #tpu.memory_space<vmem>>, vector<1x1x16x4xf32>
    %7 = vector.shape_cast %6 : vector<1x1x16x4xf32> to vector<1x16x4xf32>
    %8 = arith.truncf %7 : vector<1x16x4xf32> to vector<1x16x4xbf16>
    %9 = vector.broadcast %2 : bf16 to vector<1x16x4xbf16>
    %10 = arith.mulf %8, %9 : vector<1x16x4xbf16>
    %c0_7 = arith.constant 0 : index
    %c0_8 = arith.constant 0 : index
    %c0_9 = arith.constant 0 : index
    %c0_10 = arith.constant 0 : index
    %11 = vector.load %arg2[%c0_7, %c0_8, %c0_9, %c0_10] : memref<1x16x16x4xf32, #tpu.memory_space<vmem>>, vector<1x16x16x4xf32>
    %12 = vector.shape_cast %11 : vector<1x16x16x4xf32> to vector<16x16x4xf32>
    %13 = arith.truncf %12 : vector<16x16x4xf32> to vector<16x16x4xbf16>
    %c0_11 = arith.constant 0 : index
    %c0_12 = arith.constant 0 : index
    %c0_13 = arith.constant 0 : index
    %c0_14 = arith.constant 0 : index
    %14 = vector.load %arg4[%c0_11, %c0_12, %c0_13, %c0_14] : memref<1x1x16x4xf32, #tpu.memory_space<vmem>>, vector<1x1x16x4xf32>
    %15 = vector.shape_cast %14 : vector<1x1x16x4xf32> to vector<1x16x4xf32>
    %16 = arith.truncf %15 : vector<1x16x4xf32> to vector<1x16x4xbf16>
    %17 = vector.broadcast %5 : bf16 to vector<1x16x4xbf16>
    %18 = arith.mulf %16, %17 : vector<1x16x4xbf16>
    %19 = tpu.concatenate %10, %13, %18 in 0 : vector<1x16x4xbf16>, vector<16x16x4xbf16>, vector<1x16x4xbf16> -> vector<18x16x4xbf16>
    %cst_15 = arith.constant 0.000000e+00 : bf16
    %20 = vector.broadcast %cst_15 : bf16 to vector<18x1x4xbf16>
    %21 = tpu.concatenate %20, %19, %20 in 1 : vector<18x1x4xbf16>, vector<18x16x4xbf16>, vector<18x1x4xbf16> -> vector<18x18x4xbf16>
    %22 = vector.extract_strided_slice %21 {offsets = [0, 0, 0], sizes = [16, 16, 4], strides = [1, 1, 1]} : vector<18x18x4xbf16> to vector<16x16x4xbf16>
    %23 = vector.extract_strided_slice %21 {offsets = [0, 1, 0], sizes = [16, 16, 4], strides = [1, 1, 1]} : vector<18x18x4xbf16> to vector<16x16x4xbf16>
    %24 = vector.extract_strided_slice %21 {offsets = [0, 2, 0], sizes = [16, 16, 4], strides = [1, 1, 1]} : vector<18x18x4xbf16> to vector<16x16x4xbf16>
    %25 = vector.extract_strided_slice %21 {offsets = [1, 0, 0], sizes = [16, 16, 4], strides = [1, 1, 1]} : vector<18x18x4xbf16> to vector<16x16x4xbf16>
    %26 = vector.extract_strided_slice %21 {offsets = [1, 1, 0], sizes = [16, 16, 4], strides = [1, 1, 1]} : vector<18x18x4xbf16> to vector<16x16x4xbf16>
    %27 = vector.extract_strided_slice %21 {offsets = [1, 2, 0], sizes = [16, 16, 4], strides = [1, 1, 1]} : vector<18x18x4xbf16> to vector<16x16x4xbf16>
    %28 = vector.extract_strided_slice %21 {offsets = [2, 0, 0], sizes = [16, 16, 4], strides = [1, 1, 1]} : vector<18x18x4xbf16> to vector<16x16x4xbf16>
    %29 = vector.extract_strided_slice %21 {offsets = [2, 1, 0], sizes = [16, 16, 4], strides = [1, 1, 1]} : vector<18x18x4xbf16> to vector<16x16x4xbf16>
    %30 = vector.extract_strided_slice %21 {offsets = [2, 2, 0], sizes = [16, 16, 4], strides = [1, 1, 1]} : vector<18x18x4xbf16> to vector<16x16x4xbf16>
    %31 = tpu.concatenate %22, %23, %24, %25, %26, %27, %28, %29, %30 in 2 : vector<16x16x4xbf16>, vector<16x16x4xbf16>, vector<16x16x4xbf16>, vector<16x16x4xbf16>, vector<16x16x4xbf16>, vector<16x16x4xbf16>, vector<16x16x4xbf16>, vector<16x16x4xbf16>, vector<16x16x4xbf16> -> vector<16x16x36xbf16>
    %32 = vector.shape_cast %31 : vector<16x16x36xbf16> to vector<256x36xbf16>
    %c0_16 = arith.constant 0 : index
    %c0_17 = arith.constant 0 : index
    %33 = vector.load %arg7[%c0_16, %c0_17] : memref<36x32xbf16, #tpu.memory_space<vmem>>, vector<36x32xbf16>
    %cst_18 = arith.constant dense<0.000000e+00> : vector<256x32xf32>
    %34 = tpu.matmul %32, %33, %cst_18 {dimension_numbers = #tpu.dot_dimension_numbers<[1], [0], [0], [1], [0, 0, 1, 1], [], []>} : vector<256x36xbf16>, vector<36x32xbf16>, vector<256x32xf32> -> vector<256x32xf32>
    %c0_19 = arith.constant 0 : index
    %c0_20 = arith.constant 0 : index
    %35 = vector.load %arg8[%c0_19, %c0_20] : memref<1x32xf32, #tpu.memory_space<vmem>>, vector<1x32xf32>
    %36 = vector.broadcast %35 : vector<1x32xf32> to vector<256x32xf32>
    %37 = arith.addf %34, %36 : vector<256x32xf32>
    %c0_i32_21 = arith.constant 0 : i32
    %38 = arith.cmpi eq, %arg1, %c0_i32_21 : i32
    %39 = arith.extui %38 : i1 to i32
    %c0_i32_22 = arith.constant 0 : i32
    %40 = arith.cmpi ne, %39, %c0_i32_22 : i32
    scf.if %40 {
      %cst_41 = arith.constant 0.000000e+00 : f32
      %63 = vector.broadcast %cst_41 : f32 to vector<1x1x32xf32>
      %c0_42 = arith.constant 0 : index
      %c0_43 = arith.constant 0 : index
      %c0_44 = arith.constant 0 : index
      %64 = vector.load %arg10[%c0_42, %c0_43, %c0_44] : memref<1x1x32xf32, #tpu.memory_space<vmem>>, vector<1x1x32xf32>
      tpu.vector_store %arg10[%c0_42, %c0_43, %c0_44], %63 {strides = array<i32>} : memref<1x1x32xf32, #tpu.memory_space<vmem>>, vector<1x1x32xf32>,
      %cst_45 = arith.constant 0.000000e+00 : f32
      %65 = vector.broadcast %cst_45 : f32 to vector<1x1x32xf32>
      %c0_46 = arith.constant 0 : index
      %c0_47 = arith.constant 0 : index
      %c0_48 = arith.constant 0 : index
      %66 = vector.load %arg11[%c0_46, %c0_47, %c0_48] : memref<1x1x32xf32, #tpu.memory_space<vmem>>, vector<1x1x32xf32>
      tpu.vector_store %arg11[%c0_46, %c0_47, %c0_48], %65 {strides = array<i32>} : memref<1x1x32xf32, #tpu.memory_space<vmem>>, vector<1x1x32xf32>,
    } else {
    }
    %c0_23 = arith.constant 0 : index
    %c0_24 = arith.constant 0 : index
    %c0_25 = arith.constant 0 : index
    %41 = vector.load %arg10[%c0_23, %c0_24, %c0_25] : memref<1x1x32xf32, #tpu.memory_space<vmem>>, vector<1x1x32xf32>
    %42 = vector.shape_cast %41 : vector<1x1x32xf32> to vector<1x32xf32>
    %cst_26 = arith.constant dense<0.000000e+00> : vector<32xf32>
    %43 = vector.multi_reduction <add>, %37, %cst_26 [0] : vector<256x32xf32> to vector<32xf32>
    %44 = vector.shape_cast %43 : vector<32xf32> to vector<1x32xf32>
    %45 = arith.addf %42, %44 : vector<1x32xf32>
    %c0_27 = arith.constant 0 : index
    %c0_28 = arith.constant 0 : index
    %c0_29 = arith.constant 0 : index
    %46 = vector.load %arg10[%c0_27, %c0_28, %c0_29] : memref<1x1x32xf32, #tpu.memory_space<vmem>>, vector<1x1x32xf32>
    %47 = vector.shape_cast %46 : vector<1x1x32xf32> to vector<1x32xf32>
    %48 = vector.shape_cast %45 : vector<1x32xf32> to vector<1x1x32xf32>
    tpu.vector_store %arg10[%c0_27, %c0_28, %c0_29], %48 {strides = array<i32>} : memref<1x1x32xf32, #tpu.memory_space<vmem>>, vector<1x1x32xf32>,
    %c0_30 = arith.constant 0 : index
    %c0_31 = arith.constant 0 : index
    %c0_32 = arith.constant 0 : index
    %49 = vector.load %arg11[%c0_30, %c0_31, %c0_32] : memref<1x1x32xf32, #tpu.memory_space<vmem>>, vector<1x1x32xf32>
    %50 = vector.shape_cast %49 : vector<1x1x32xf32> to vector<1x32xf32>
    %51 = arith.mulf %37, %37 : vector<256x32xf32>
    %cst_33 = arith.constant dense<0.000000e+00> : vector<32xf32>
    %52 = vector.multi_reduction <add>, %51, %cst_33 [0] : vector<256x32xf32> to vector<32xf32>
    %53 = vector.shape_cast %52 : vector<32xf32> to vector<1x32xf32>
    %54 = arith.addf %50, %53 : vector<1x32xf32>
    %c0_34 = arith.constant 0 : index
    %c0_35 = arith.constant 0 : index
    %c0_36 = arith.constant 0 : index
    %55 = vector.load %arg11[%c0_34, %c0_35, %c0_36] : memref<1x1x32xf32, #tpu.memory_space<vmem>>, vector<1x1x32xf32>
    %56 = vector.shape_cast %55 : vector<1x1x32xf32> to vector<1x32xf32>
    %57 = vector.shape_cast %54 : vector<1x32xf32> to vector<1x1x32xf32>
    tpu.vector_store %arg11[%c0_34, %c0_35, %c0_36], %57 {strides = array<i32>} : memref<1x1x32xf32, #tpu.memory_space<vmem>>, vector<1x1x32xf32>,
    %58 = vector.shape_cast %37 : vector<256x32xf32> to vector<16x16x32xf32>
    %59 = arith.truncf %58 : vector<16x16x32xf32> to vector<16x16x32xbf16>
    %c0_37 = arith.constant 0 : index
    %c0_38 = arith.constant 0 : index
    %c0_39 = arith.constant 0 : index
    %c0_40 = arith.constant 0 : index
    %60 = vector.load %arg9[%c0_37, %c0_38, %c0_39, %c0_40] : memref<1x16x16x32xbf16, #tpu.memory_space<vmem>>, vector<1x16x16x32xbf16>
    %61 = vector.shape_cast %60 : vector<1x16x16x32xbf16> to vector<16x16x32xbf16>
    %62 = vector.shape_cast %59 : vector<16x16x32xbf16> to vector<1x16x16x32xbf16>
    tpu.vector_store %arg9[%c0_37, %c0_38, %c0_39, %c0_40], %62 {strides = array<i32>} : memref<1x16x16x32xbf16, #tpu.memory_space<vmem>>, vector<1x16x16x32xbf16>,
    return
  }
  func.func @transform_0(%arg0: i32, %arg1: i32) -> (i32, i32, i32, i32) {
    %c0_i32 = arith.constant 0 : i32
    %c0_i32_0 = arith.constant 0 : i32
    %c0_i32_1 = arith.constant 0 : i32
    return %arg0, %arg1, %c0_i32, %c0_i32_0 : i32, i32, i32, i32
  }
  func.func @transform_1(%arg0: i32, %arg1: i32) -> (i32, i32, i32, i32) {
    %c16_i32 = arith.constant 16 : i32
    %0 = arith.muli %arg1, %c16_i32 : i32
    %c1_i32 = arith.constant 1 : i32
    %1 = arith.subi %0, %c1_i32 : i32
    %c0_i32 = arith.constant 0 : i32
    %2 = arith.maxsi %1, %c0_i32 : i32
    %c0_i32_0 = arith.constant 0 : i32
    %c0_i32_1 = arith.constant 0 : i32
    %c0_i32_2 = arith.constant 0 : i32
    return %arg0, %2, %c0_i32_0, %c0_i32_1 : i32, i32, i32, i32
  }
  func.func @transform_2(%arg0: i32, %arg1: i32) -> (i32, i32, i32, i32) {
    %c1_i32 = arith.constant 1 : i32
    %0 = arith.addi %arg1, %c1_i32 : i32
    %c16_i32 = arith.constant 16 : i32
    %1 = arith.muli %0, %c16_i32 : i32
    %c15_i32 = arith.constant 15 : i32
    %2 = arith.minsi %1, %c15_i32 : i32
    %c0_i32 = arith.constant 0 : i32
    %c0_i32_0 = arith.constant 0 : i32
    %c0_i32_1 = arith.constant 0 : i32
    return %arg0, %2, %c0_i32, %c0_i32_0 : i32, i32, i32, i32
  }
  func.func @transform_3(%arg0: i32, %arg1: i32) -> (i32, i32) {
    %c0_i32 = arith.constant 0 : i32
    %c0_i32_0 = arith.constant 0 : i32
    %c0_i32_1 = arith.constant 0 : i32
    return %c0_i32, %c0_i32_0 : i32, i32
  }
  func.func @transform_4(%arg0: i32, %arg1: i32) -> (i32, i32) {
    %c0_i32 = arith.constant 0 : i32
    %c0_i32_0 = arith.constant 0 : i32
    %c0_i32_1 = arith.constant 0 : i32
    return %c0_i32, %c0_i32_0 : i32, i32
  }
  func.func @transform_5(%arg0: i32, %arg1: i32) -> (i32, i32) {
    %c0_i32 = arith.constant 0 : i32
    %c0_i32_0 = arith.constant 0 : i32
    %c0_i32_1 = arith.constant 0 : i32
    return %c0_i32, %c0_i32_0 : i32, i32
  }
  func.func @transform_6(%arg0: i32, %arg1: i32) -> (i32, i32) {
    %c0_i32 = arith.constant 0 : i32
    %c0_i32_0 = arith.constant 0 : i32
    %c0_i32_1 = arith.constant 0 : i32
    return %c0_i32, %c0_i32_0 : i32, i32
  }
  func.func @transform_7(%arg0: i32, %arg1: i32) -> (i32, i32, i32, i32) {
    %c0_i32 = arith.constant 0 : i32
    %c0_i32_0 = arith.constant 0 : i32
    %c0_i32_1 = arith.constant 0 : i32
    return %arg0, %arg1, %c0_i32, %c0_i32_0 : i32, i32, i32, i32
  }
  func.func @transform_8(%arg0: i32, %arg1: i32) -> (i32, i32, i32) {
    %c0_i32 = arith.constant 0 : i32
    %c0_i32_0 = arith.constant 0 : i32
    %c0_i32_1 = arith.constant 0 : i32
    return %arg0, %c0_i32, %c0_i32_0 : i32, i32, i32
  }
  func.func @transform_9(%arg0: i32, %arg1: i32) -> (i32, i32, i32) {
    %c0_i32 = arith.constant 0 : i32
    %c0_i32_0 = arith.constant 0 : i32
    %c0_i32_1 = arith.constant 0 : i32
    return %arg0, %c0_i32, %c0_i32_0 : i32, i32, i32
  }
}

</mosaic_0001>

<llo_original>
// kernel: tpu_custom_call.1
$region0: #{tpu_custom_call.1}
  #allocation0 [shape = 'u32[]', space=smem, size = 0x4, offset = 0x4, fixed_abs, tag = 'smem constant byte address 0x4 - core index']
  #allocation1 [shape = 'u32[144,128]{1,0:T(1,128)}', space=vmem, size = 0x12000, scoped, tag = 'internal scratch']
  %s0 = inlined_call_operand.vmem [shape: f32[2,16,16,4], index: 0, kind: input, shape index: {}]
  %s1 = inlined_call_operand.vmem [shape: f32[2,16,16,4], index: 1, kind: input, shape index: {}]
  %s2 = inlined_call_operand.vmem [shape: f32[2,16,16,4], index: 2, kind: input, shape index: {}]
  %s3 = inlined_call_operand.vmem [shape: f32[1,4], index: 3, kind: input, shape index: {}]
  %s4 = inlined_call_operand.vmem [shape: f32[1,4], index: 4, kind: input, shape index: {}]
  %s5 = inlined_call_operand.vmem [shape: bf16[36,32], index: 5, kind: input, shape index: {}]
  %s6 = inlined_call_operand.vmem [shape: f32[1,32], index: 6, kind: input, shape index: {}]
  %s7 = inlined_call_operand.hbm [shape: bf16[2,16,16,32], index: 7, kind: output, shape index: {0}]
  %s8 = inlined_call_operand.hbm [shape: f32[2,1,32], index: 8, kind: output, shape index: {1}]
  %s9 = inlined_call_operand.hbm [shape: f32[2,1,32], index: 9, kind: output, shape index: {2}]
  %10 = xla_tuple %s7, %s8, %s9
  %s11 = sld [smem:[#allocation0]]
  $region81: #{tpu_custom_call.1} parent=0
    _
  %s13 = ssub.s32 1, %s11
  %s14 = scalar_select 0, %s13, %s11
  $region1: #{tpu_custom_call.1} parent=0
    #allocation2 [shape = 'u8[131072]{0}', space=vmem, size = 0x20000, scoped, tag = 'output window, operand 0']
    #allocation3 [shape = 's32[2]{0}', space=sflag, size = 0x8, scoped, tag = 'scoped memory for tpu_custom_call.1']
    #allocation4 [shape = 'u8[1024]{0}', space=vmem, size = 0x400, scoped, tag = 'output window, operand 1']
    #allocation5 [shape = 's32[2]{0}', space=sflag, size = 0x8, scoped, tag = 'scoped memory for tpu_custom_call.1']
    #allocation6 [shape = 'u8[1024]{0}', space=vmem, size = 0x400, scoped, tag = 'output window, operand 2']
    %15 = vsyncpa [#allocation3], 0
    %s16 = scalar_lea.sflag [#allocation3], 1
    %17 = vsyncpa %s16, 0
    %18 = vsyncpa [#allocation5], 0
    %s19 = scalar_lea.sflag [#allocation5], 1
    %20 = vsyncpa %s19, 0
    loop: start=0, step=1, limit=4
    $region2: #{tpu_custom_call.1} parent=1 // loop_pre_header
      _
    $region3: #{tpu_custom_call.1} parent=1 // loop_header
      %s22 = sphi 0, %s26
      %p23 = scmp.ge.s32.totalorder %s22, 4
      %s29 = sphi 0, %s41
      %s30 = sphi 0, %s37
      %s31 = sphi 0, %s29
      %s32 = sphi 0, %s30
      %s33 = sphi 0, %s31
      %s34 = sphi 0, %s32
      %s46 = sphi 0, %s48
      %s49 = sphi 0, %s46
      %s50 = sphi 0, %s49
      %s66 = sphi 0, %s50
      %s82 = sphi 0, %s84
      %s85 = sphi 0, %s82
      %s86 = sphi 0, %s85
      %s102 = sphi 0, %s86
      %s118 = sphi 0, %s120
      %s121 = sphi 0, %s118
      %s122 = sphi 0, %s121
      %s138 = sphi 0, %s122
      %s142 = sphi 0, %s142
      %s144 = sphi 0, %s142
      %s145 = sphi 0, %s144
      %s159 = sphi 0, %s145
      %s163 = sphi 0, %s163
      %s165 = sphi 0, %s163
      %s166 = sphi 0, %s165
      %s180 = sphi 0, %s166
      %s184 = sphi 0, %s184
      %s186 = sphi 0, %s184
      %s187 = sphi 0, %s186
      %s201 = sphi 0, %s187
      %s205 = sphi 0, %s205
      %s207 = sphi 0, %s205
      %s208 = sphi 0, %s207
      %s222 = sphi 0, %s208
      %s230 = sphi 0, %s232
      %s233 = sphi 0, %s230
      %s234 = sphi 0, %s233
      %s250 = sphi 0, %s234
      %s256 = sphi 0, %s258
      %s259 = sphi 0, %s256
      %s260 = sphi 0, %s259
      %s276 = sphi 0, %s260
      %s282 = sphi 0, %s284
      %s285 = sphi 0, %s282
      %s286 = sphi 0, %s285
      %s302 = sphi 0, %s286
    $region4: #{tpu_custom_call.1} parent=1 // loop_header_branch
      %25 = sbr.rel (%p23) target = $region8
    $region5: #{tpu_custom_call.1} parent=1 // loop_body
      %s27 = ssub.s32 %s22, 1
      %s28 = ssub.s32 %s22, 2
      %s35 = sadd.s32 1, %s30
      %p36 = scmp.ge.s32.totalorder %s35, 1
      %s37 = scalar_select %p36, 0, %s35
      %s38 = sadd.s32 1, %s29
      %s39 = scalar_select %p36, %s38, %s29
      %p40 = scmp.ge.s32.totalorder %s39, 2
      %s41 = scalar_select %p40, 0, %s39
      %s42 = ssub.s32 %s29, %s41
      %s43 = ssub.s32 %s30, %s37
      %s44 = sor.u32 %s42, %s43
      %p45 = scmp.eq.s32.totalorder %s44, 0
      %s47 = sadd.s32 %s46, 1
      %s48 = scalar_select %p45, %s46, %s47
      %p51 = pneg %p45
      %p52 = scmp.eq.s32.totalorder %s22, 1
      %p53 = por %p51, %p52
      %p54 = scmp.ne.s32.totalorder %s46, %s49
      %p55 = scmp.eq.s32.totalorder %s22, 0
      %p56 = por %p54, %p55
      %p57 = scmp.ne.s32.totalorder %s46, %s49
      %p58 = scmp.eq.s32.totalorder %s27, 1
      %p59 = por %p57, %p58
      %p60 = scmp.ne.s32.totalorder %s49, %s50
      %p61 = scmp.eq.s32.totalorder %s27, 0
      %p62 = por %p60, %p61
      %p63 = scmp.ne.s32.totalorder %s49, %s50
      %p64 = scmp.eq.s32.totalorder %s28, 1
      %p65 = por %p63, %p64
      %p67 = scmp.ne.s32.totalorder %s50, %s66
      %p68 = scmp.eq.s32.totalorder %s28, 0
      %p69 = por %p67, %p68
      %s70 = smul.u32 %s30, 16
      %s71 = ssub.s32 %s70, 1
      %p72 = scmp.gt.s32.totalorder %s71, 0
      %s73 = scalar_select %p72, %s71, 0
      %s74 = smul.u32 %s37, 16
      %s75 = ssub.s32 %s74, 1
      %p76 = scmp.gt.s32.totalorder %s75, 0
      %s77 = scalar_select %p76, %s75, 0
      %s78 = ssub.s32 %s29, %s41
      %s79 = ssub.s32 %s73, %s77
      %s80 = sor.u32 %s78, %s79
      %p81 = scmp.eq.s32.totalorder %s80, 0
      %s83 = sadd.s32 %s82, 1
      %s84 = scalar_select %p81, %s82, %s83
      %p87 = pneg %p81
      %p88 = scmp.eq.s32.totalorder %s22, 1
      %p89 = por %p87, %p88
      %p90 = scmp.ne.s32.totalorder %s82, %s85
      %p91 = scmp.eq.s32.totalorder %s22, 0
      %p92 = por %p90, %p91
      %p93 = scmp.ne.s32.totalorder %s82, %s85
      %p94 = scmp.eq.s32.totalorder %s27, 1
      %p95 = por %p93, %p94
      %p96 = scmp.ne.s32.totalorder %s85, %s86
      %p97 = scmp.eq.s32.totalorder %s27, 0
      %p98 = por %p96, %p97
      %p99 = scmp.ne.s32.totalorder %s85, %s86
      %p100 = scmp.eq.s32.totalorder %s28, 1
      %p101 = por %p99, %p100
      %p103 = scmp.ne.s32.totalorder %s86, %s102
      %p104 = scmp.eq.s32.totalorder %s28, 0
      %p105 = por %p103, %p104
      %s106 = sadd.s32 %s30, 1
      %s107 = smul.u32 %s106, 16
      %p108 = scmp.lt.s32.totalorder %s107, 15
      %s109 = scalar_select %p108, %s107, 15
      %s110 = sadd.s32 %s37, 1
      %s111 = smul.u32 %s110, 16
      %p112 = scmp.lt.s32.totalorder %s111, 15
      %s113 = scalar_select %p112, %s111, 15
      %s114 = ssub.s32 %s29, %s41
      %s115 = ssub.s32 %s109, %s113
      %s116 = sor.u32 %s114, %s115
      %p117 = scmp.eq.s32.totalorder %s116, 0
      %s119 = sadd.s32 %s118, 1
      %s120 = scalar_select %p117, %s118, %s119
      %p123 = pneg %p117
      %p124 = scmp.eq.s32.totalorder %s22, 1
      %p125 = por %p123, %p124
      %p126 = scmp.ne.s32.totalorder %s118, %s121
      %p127 = scmp.eq.s32.totalorder %s22, 0
      %p128 = por %p126, %p127
      %p129 = scmp.ne.s32.totalorder %s118, %s121
      %p130 = scmp.eq.s32.totalorder %s27, 1
      %p131 = por %p129, %p130
      %p132 = scmp.ne.s32.totalorder %s121, %s122
      %p133 = scmp.eq.s32.totalorder %s27, 0
      %p134 = por %p132, %p133
      %p135 = scmp.ne.s32.totalorder %s121, %s122
      %p136 = scmp.eq.s32.totalorder %s28, 1
      %p137 = por %p135, %p136
      %p139 = scmp.ne.s32.totalorder %s122, %s138
      %p140 = scmp.eq.s32.totalorder %s28, 0
      %p141 = por %p139, %p140
      %s143 = sadd.s32 %s142, 1
      %p146 = scmp.eq.s32.totalorder %s22, 1
      %p147 = scmp.ne.s32.totalorder %s142, %s144
      %p148 = scmp.eq.s32.totalorder %s22, 0
      %p149 = por %p147, %p148
      %p150 = scmp.ne.s32.totalorder %s142, %s144
      %p151 = scmp.eq.s32.totalorder %s27, 1
      %p152 = por %p150, %p151
      %p153 = scmp.ne.s32.totalorder %s144, %s145
      %p154 = scmp.eq.s32.totalorder %s27, 0
      %p155 = por %p153, %p154
      %p156 = scmp.ne.s32.totalorder %s144, %s145
      %p157 = scmp.eq.s32.totalorder %s28, 1
      %p158 = por %p156, %p157
      %p160 = scmp.ne.s32.totalorder %s145, %s159
      %p161 = scmp.eq.s32.totalorder %s28, 0
      %p162 = por %p160, %p161
      %s164 = sadd.s32 %s163, 1
      %p167 = scmp.eq.s32.totalorder %s22, 1
      %p168 = scmp.ne.s32.totalorder %s163, %s165
      %p169 = scmp.eq.s32.totalorder %s22, 0
      %p170 = por %p168, %p169
      %p171 = scmp.ne.s32.totalorder %s163, %s165
      %p172 = scmp.eq.s32.totalorder %s27, 1
      %p173 = por %p171, %p172
      %p174 = scmp.ne.s32.totalorder %s165, %s166
      %p175 = scmp.eq.s32.totalorder %s27, 0
      %p176 = por %p174, %p175
      %p177 = scmp.ne.s32.totalorder %s165, %s166
      %p178 = scmp.eq.s32.totalorder %s28, 1
      %p179 = por %p177, %p178
      %p181 = scmp.ne.s32.totalorder %s166, %s180
      %p182 = scmp.eq.s32.totalorder %s28, 0
      %p183 = por %p181, %p182
      %s185 = sadd.s32 %s184, 1
      %p188 = scmp.eq.s32.totalorder %s22, 1
      %p189 = scmp.ne.s32.totalorder %s184, %s186
      %p190 = scmp.eq.s32.totalorder %s22, 0
      %p191 = por %p189, %p190
      %p192 = scmp.ne.s32.totalorder %s184, %s186
      %p193 = scmp.eq.s32.totalorder %s27, 1
      %p194 = por %p192, %p193
      %p195 = scmp.ne.s32.totalorder %s186, %s187
      %p196 = scmp.eq.s32.totalorder %s27, 0
      %p197 = por %p195, %p196
      %p198 = scmp.ne.s32.totalorder %s186, %s187
      %p199 = scmp.eq.s32.totalorder %s28, 1
      %p200 = por %p198, %p199
      %p202 = scmp.ne.s32.totalorder %s187, %s201
      %p203 = scmp.eq.s32.totalorder %s28, 0
      %p204 = por %p202, %p203
      %s206 = sadd.s32 %s205, 1
      %p209 = scmp.eq.s32.totalorder %s22, 1
      %p210 = scmp.ne.s32.totalorder %s205, %s207
      %p211 = scmp.eq.s32.totalorder %s22, 0
      %p212 = por %p210, %p211
      %p213 = scmp.ne.s32.totalorder %s205, %s207
      %p214 = scmp.eq.s32.totalorder %s27, 1
      %p215 = por %p213, %p214
      %p216 = scmp.ne.s32.totalorder %s207, %s208
      %p217 = scmp.eq.s32.totalorder %s27, 0
      %p218 = por %p216, %p217
      %p219 = scmp.ne.s32.totalorder %s207, %s208
      %p220 = scmp.eq.s32.totalorder %s28, 1
      %p221 = por %p219, %p220
      %p223 = scmp.ne.s32.totalorder %s208, %s222
      %p224 = scmp.eq.s32.totalorder %s28, 0
      %p225 = por %p223, %p224
      %s226 = ssub.s32 %s29, %s41
      %s227 = ssub.s32 %s30, %s37
      %s228 = sor.u32 %s226, %s227
      %p229 = scmp.eq.s32.totalorder %s228, 0
      %s231 = sadd.s32 %s230, 1
      %s232 = scalar_select %p229, %s230, %s231
      %p235 = pneg %p229
      %p236 = scmp.eq.s32.totalorder %s22, 1
      %p237 = por %p235, %p236
      %p238 = scmp.ne.s32.totalorder %s230, %s233
      %p239 = scmp.eq.s32.totalorder %s22, 0
      %p240 = por %p238, %p239
      %p241 = scmp.ne.s32.totalorder %s230, %s233
      %p242 = scmp.eq.s32.totalorder %s27, 1
      %p243 = por %p241, %p242
      %p244 = scmp.ne.s32.totalorder %s233, %s234
      %p245 = scmp.eq.s32.totalorder %s27, 0
      %p246 = por %p244, %p245
      %p247 = scmp.ne.s32.totalorder %s233, %s234
      %p248 = scmp.eq.s32.totalorder %s28, 1
      %p249 = por %p247, %p248
      %p251 = scmp.ne.s32.totalorder %s234, %s250
      %p252 = scmp.eq.s32.totalorder %s28, 0
      %p253 = por %p251, %p252
      %s254 = ssub.s32 %s29, %s41
      %p255 = scmp.eq.s32.totalorder %s254, 0
      %s257 = sadd.s32 %s256, 1
      %s258 = scalar_select %p255, %s256, %s257
      %p261 = pneg %p255
      %p262 = scmp.eq.s32.totalorder %s22, 1
      %p263 = por %p261, %p262
      %p264 = scmp.ne.s32.totalorder %s256, %s259
      %p265 = scmp.eq.s32.totalorder %s22, 0
      %p266 = por %p264, %p265
      %p267 = scmp.ne.s32.totalorder %s256, %s259
      %p268 = scmp.eq.s32.totalorder %s27, 1
      %p269 = por %p267, %p268
      %p270 = scmp.ne.s32.totalorder %s259, %s260
      %p271 = scmp.eq.s32.totalorder %s27, 0
      %p272 = por %p270, %p271
      %p273 = scmp.ne.s32.totalorder %s259, %s260
      %p274 = scmp.eq.s32.totalorder %s28, 1
      %p275 = por %p273, %p274
      %p277 = scmp.ne.s32.totalorder %s260, %s276
      %p278 = scmp.eq.s32.totalorder %s28, 0
      %p279 = por %p277, %p278
      %s280 = ssub.s32 %s29, %s41
      %p281 = scmp.eq.s32.totalorder %s280, 0
      %s283 = sadd.s32 %s282, 1
      %s284 = scalar_select %p281, %s282, %s283
      %p287 = pneg %p281
      %p288 = scmp.eq.s32.totalorder %s22, 1
      %p289 = por %p287, %p288
      %p290 = scmp.ne.s32.totalorder %s282, %s285
      %p291 = scmp.eq.s32.totalorder %s22, 0
      %p292 = por %p290, %p291
      %p293 = scmp.ne.s32.totalorder %s282, %s285
      %p294 = scmp.eq.s32.totalorder %s27, 1
      %p295 = por %p293, %p294
      %p296 = scmp.ne.s32.totalorder %s285, %s286
      %p297 = scmp.eq.s32.totalorder %s27, 0
      %p298 = por %p296, %p297
      %p299 = scmp.ne.s32.totalorder %s285, %s286
      %p300 = scmp.eq.s32.totalorder %s28, 1
      %p301 = por %p299, %p300
      %p303 = scmp.ne.s32.totalorder %s286, %s302
      %p304 = scmp.eq.s32.totalorder %s28, 0
      %p305 = por %p303, %p304
      %p306 = scmp.le.s32.totalorder 1, %s22
      %p307 = scmp.lt.s32.totalorder %s22, 3
      %p308 = pnand %p306, %p307
      %p309 = pneg %p308
      // Predicated region
      $region9: #{tpu_custom_call.1} parent=5 // pred_check
        _
      $region10: #{tpu_custom_call.1} parent=5 // pred_check_branch
        %311 = sbr.rel (%p308) target = $region12
      $region11: #{tpu_custom_call.1} parent=5 // pred_region
        %s312 = ssub.s32 %s22, 1
        // Predicated region
        $region13: #{tpu_custom_call.1} parent=11 // pred_check
          %p313 = pneg %p155
        $region14: #{tpu_custom_call.1} parent=11 // pred_check_branch
          %315 = sbr.rel (%p313) target = $region16
        $region15: #{tpu_custom_call.1} parent=11 // pred_region
          _
        $region16: #{tpu_custom_call.1} parent=11 // pred_fallthru
          _
        // Predicated region
        $region17: #{tpu_custom_call.1} parent=11 // pred_check
          %p316 = pneg %p176
        $region18: #{tpu_custom_call.1} parent=11 // pred_check_branch
          %318 = sbr.rel (%p316) target = $region20
        $region19: #{tpu_custom_call.1} parent=11 // pred_region
          _
        $region20: #{tpu_custom_call.1} parent=11 // pred_fallthru
          _
        // Predicated region
        $region21: #{tpu_custom_call.1} parent=11 // pred_check
          %p319 = pneg %p197
        $region22: #{tpu_custom_call.1} parent=11 // pred_check_branch
          %321 = sbr.rel (%p319) target = $region24
        $region23: #{tpu_custom_call.1} parent=11 // pred_region
          _
        $region24: #{tpu_custom_call.1} parent=11 // pred_fallthru
          _
        // Predicated region
        $region25: #{tpu_custom_call.1} parent=11 // pred_check
          %p322 = pneg %p218
        $region26: #{tpu_custom_call.1} parent=11 // pred_check_branch
          %324 = sbr.rel (%p322) target = $region28
        $region27: #{tpu_custom_call.1} parent=11 // pred_region
          _
        $region28: #{tpu_custom_call.1} parent=11 // pred_fallthru
          _
      $region12: #{tpu_custom_call.1} parent=5 // pred_fallthru
        _
      %p325 = scmp.lt.s32.totalorder %s22, 2
      // Predicated region
      $region29: #{tpu_custom_call.1} parent=5 // pred_check
        %p326 = pneg %p325
      $region30: #{tpu_custom_call.1} parent=5 // pred_check_branch
        %328 = sbr.rel (%p326) target = $region32
      $region31: #{tpu_custom_call.1} parent=5 // pred_region
        // Predicated region
        $region33: #{tpu_custom_call.1} parent=31 // pred_check
          %p329 = pneg %p56
        $region34: #{tpu_custom_call.1} parent=31 // pred_check_branch
          %331 = sbr.rel (%p329) target = $region36
        $region35: #{tpu_custom_call.1} parent=31 // pred_region
          %s332 = smul.u32 16, %s30
          %p333 = scmp.lt.s32.totalorder %s29, 1
          %s334 = scalar_select %p333, %s29, 1
          %p335 = scmp.lt.s32.totalorder %s332, 15
          %s336 = scalar_select %p335, %s332, 15
          %s337 = smul.addr %s336, 2
          %s338 = smul.addr %s334, 32
          %s339 = sadd.s32 %s337, %s338
          %s340 = smul.addr %s339, 8
          %s341 = scalar_lea.vmem %s0, %s340
          %s342 = smul.u32 16, %s30
        $region36: #{tpu_custom_call.1} parent=31 // pred_fallthru
          _
        // Predicated region
        $region37: #{tpu_custom_call.1} parent=31 // pred_check
          %p343 = pneg %p92
        $region38: #{tpu_custom_call.1} parent=31 // pred_check_branch
          %345 = sbr.rel (%p343) target = $region40
        $region39: #{tpu_custom_call.1} parent=31 // pred_region
          %s346 = smul.u32 %s30, 16
          %s347 = ssub.s32 %s346, 1
          %p348 = scmp.gt.s32.totalorder %s347, 0
          %s349 = scalar_select %p348, %s347, 0
          %p350 = scmp.lt.s32.totalorder %s29, 1
          %s351 = scalar_select %p350, %s29, 1
          %p352 = scmp.lt.s32.totalorder %s349, 15
          %s353 = scalar_select %p352, %s349, 15
          %s354 = smul.addr %s353, 2
          %s355 = smul.addr %s351, 32
          %s356 = sadd.s32 %s354, %s355
          %s357 = smul.addr %s356, 8
          %s358 = scalar_lea.vmem %s1, %s357
          %s359 = smul.u32 %s30, 16
          %s360 = ssub.s32 %s359, 1
          %p361 = scmp.gt.s32.totalorder %s360, 0
          %s362 = scalar_select %p361, %s360, 0
        $region40: #{tpu_custom_call.1} parent=31 // pred_fallthru
          _
        // Predicated region
        $region41: #{tpu_custom_call.1} parent=31 // pred_check
          %p363 = pneg %p128
        $region42: #{tpu_custom_call.1} parent=31 // pred_check_branch
          %365 = sbr.rel (%p363) target = $region44
        $region43: #{tpu_custom_call.1} parent=31 // pred_region
          %s366 = sadd.s32 %s30, 1
          %s367 = smul.u32 %s366, 16
          %p368 = scmp.lt.s32.totalorder %s367, 15
          %s369 = scalar_select %p368, %s367, 15
          %p370 = scmp.lt.s32.totalorder %s29, 1
          %s371 = scalar_select %p370, %s29, 1
          %p372 = scmp.lt.s32.totalorder %s369, 15
          %s373 = scalar_select %p372, %s369, 15
          %s374 = smul.addr %s373, 2
          %s375 = smul.addr %s371, 32
          %s376 = sadd.s32 %s374, %s375
          %s377 = smul.addr %s376, 8
          %s378 = scalar_lea.vmem %s2, %s377
          %s379 = sadd.s32 %s30, 1
          %s380 = smul.u32 %s379, 16
          %p381 = scmp.lt.s32.totalorder %s380, 15
          %s382 = scalar_select %p381, %s380, 15
        $region44: #{tpu_custom_call.1} parent=31 // pred_fallthru
          _
      $region32: #{tpu_custom_call.1} parent=5 // pred_fallthru
        _
      %p383 = scmp.le.s32.totalorder 1, %s22
      %p384 = scmp.lt.s32.totalorder %s22, 3
      %p385 = pnand %p383, %p384
      %p386 = pneg %p385
      // Predicated region
      $region45: #{tpu_custom_call.1} parent=5 // pred_check
        _
      $region46: #{tpu_custom_call.1} parent=5 // pred_check_branch
        %388 = sbr.rel (%p385) target = $region48
      $region47: #{tpu_custom_call.1} parent=5 // pred_region
        %s389 = ssub.s32 %s22, 1
        %s390 = smul.u32 16, %s32
        %p391 = scmp.lt.s32.totalorder %s31, 1
        %s392 = scalar_select %p391, %s31, 1
        %p393 = scmp.lt.s32.totalorder %s390, 15
        %s394 = scalar_select %p393, %s390, 15
        %s395 = smul.addr %s394, 2
        %s396 = smul.addr %s392, 32
        %s397 = sadd.s32 %s395, %s396
        %s398 = smul.addr %s397, 8
        %s399 = scalar_lea.vmem %s0, %s398
        %p400 = pneg %p62
        %p401 = pneg %p59
        %s402 = smul.u32 %s32, 16
        %s403 = ssub.s32 %s402, 1
        %p404 = scmp.gt.s32.totalorder %s403, 0
        %s405 = scalar_select %p404, %s403, 0
        %p406 = scmp.lt.s32.totalorder %s31, 1
        %s407 = scalar_select %p406, %s31, 1
        %p408 = scmp.lt.s32.totalorder %s405, 15
        %s409 = scalar_select %p408, %s405, 15
        %s410 = smul.addr %s409, 2
        %s411 = smul.addr %s407, 32
        %s412 = sadd.s32 %s410, %s411
        %s413 = smul.addr %s412, 8
        %s414 = scalar_lea.vmem %s1, %s413
        %p415 = pneg %p98
        %p416 = pneg %p95
        %s417 = sadd.s32 %s32, 1
        %s418 = smul.u32 %s417, 16
        %p419 = scmp.lt.s32.totalorder %s418, 15
        %s420 = scalar_select %p419, %s418, 15
        %p421 = scmp.lt.s32.totalorder %s31, 1
        %s422 = scalar_select %p421, %s31, 1
        %p423 = scmp.lt.s32.totalorder %s420, 15
        %s424 = scalar_select %p423, %s420, 15
        %s425 = smul.addr %s424, 2
        %s426 = smul.addr %s422, 32
        %s427 = sadd.s32 %s425, %s426
        %s428 = smul.addr %s427, 8
        %s429 = scalar_lea.vmem %s2, %s428
        %p430 = pneg %p134
        %p431 = pneg %p131
        %p432 = pneg %p155
        %p433 = pneg %p152
        %p434 = pneg %p176
        %p435 = pneg %p173
        %p436 = pneg %p197
        %p437 = pneg %p194
        %p438 = pneg %p218
        %p439 = pneg %p215
        %p440 = pneg %p246
        %p441 = pneg %p243
        %s442 = sand.u32 %s233, 1
        %s443 = scalar_lea.sflag [#allocation3], %s442
        %s444 = sand.u32 %s233, 1
        %s445 = smul.addr %s444, 128
        %s446 = scalar_lea.vmem [#allocation2], %s445
        %p447 = pneg %p272
        %p448 = pneg %p269
        %s449 = sand.u32 %s27, 1
        %s450 = scalar_lea.sflag [#allocation5], %s449
        %s451 = sand.u32 %s259, 1
        %s452 = scalar_lea.vmem [#allocation4], %s451
        %p453 = pneg %p298
        %p454 = pneg %p295
        %s455 = sand.u32 %s27, 1
        %s456 = scalar_lea.sflag [#allocation5], %s455
        %s457 = sand.u32 %s285, 1
        %s458 = scalar_lea.vmem [#allocation6], %s457
        %s459 = smul.u32 16, %s32
        %p460 = scmp.lt.s32.totalorder %s31, 1
        %s461 = scalar_select %p460, %s31, 1
        %p462 = scmp.lt.s32.totalorder %s459, 15
        %s463 = scalar_select %p462, %s459, 15
        %s464 = smul.addr %s463, 2
        %s465 = smul.addr %s461, 32
        %s466 = sadd.s32 %s464, %s465
        %s467 = smul.addr %s466, 8
        %s468 = scalar_lea.vmem %s0, %s467
        %s469 = smul.u32 16, %s32
        %s470 = smul.u32 %s32, 16
        %s471 = ssub.s32 %s470, 1
        %p472 = scmp.gt.s32.totalorder %s471, 0
        %s473 = scalar_select %p472, %s471, 0
        %p474 = scmp.lt.s32.totalorder %s31, 1
        %s475 = scalar_select %p474, %s31, 1
        %p476 = scmp.lt.s32.totalorder %s473, 15
        %s477 = scalar_select %p476, %s473, 15
        %s478 = smul.addr %s477, 2
        %s479 = smul.addr %s475, 32
        %s480 = sadd.s32 %s478, %s479
        %s481 = smul.addr %s480, 8
        %s482 = scalar_lea.vmem %s1, %s481
        %s483 = smul.u32 %s32, 16
        %s484 = ssub.s32 %s483, 1
        %p485 = scmp.gt.s32.totalorder %s484, 0
        %s486 = scalar_select %p485, %s484, 0
        %s487 = sadd.s32 %s32, 1
        %s488 = smul.u32 %s487, 16
        %p489 = scmp.lt.s32.totalorder %s488, 15
        %s490 = scalar_select %p489, %s488, 15
        %p491 = scmp.lt.s32.totalorder %s31, 1
        %s492 = scalar_select %p491, %s31, 1
        %p493 = scmp.lt.s32.totalorder %s490, 15
        %s494 = scalar_select %p493, %s490, 15
        %s495 = smul.addr %s494, 2
        %s496 = smul.addr %s492, 32
        %s497 = sadd.s32 %s495, %s496
        %s498 = smul.addr %s497, 8
        %s499 = scalar_lea.vmem %s2, %s498
        %s500 = sadd.s32 %s32, 1
        %s501 = smul.u32 %s500, 16
        %p502 = scmp.lt.s32.totalorder %s501, 15
        %s503 = scalar_select %p502, %s501, 15
        %s504 = smul.u32 16, %s32
        %p506 = scmp.gt.s32.totalorder %s32, 0
        %s507 = scalar_select %p506, 1.0, 0.0
        %p509 = scmp.ne.f32.partialorder %s507, %s507
        %s510 = sshrl.u32 %s507, 16
        %s511 = sand.u32 %s510, 1
        %s512 = sadd.s32 32767, %s511
        %s513 = sadd.s32 %s507, %s512
        %s514 = sand.u32 %s513, 4294901760
        %s515 = scalar_select %p509, 2143289344, %s514
        %s517 = sshrl.u32 %s515, 16
        %p518 = scmp.lt.s32.totalorder %s32, 0
        %s519 = scalar_select %p518, 1.0, 0.0
        %p521 = scmp.ne.f32.partialorder %s519, %s519
        %s522 = sshrl.u32 %s519, 16
        %s523 = sand.u32 %s522, 1
        %s524 = sadd.s32 32767, %s523
        %s525 = sadd.s32 %s519, %s524
        %s526 = sand.u32 %s525, 4294901760
        %s527 = scalar_select %p521, 2143289344, %s526
        %s529 = sshrl.u32 %s527, 16
        %v530 = vld [vmem:[%s482] sm:$0xff]
        %v531 = vld [vmem:[%s482 + $0x8] sm:$0xff]
        %v532 = vpack.c.bf16 %v531, %v530
        %s533 = sshll.u32 %s517, 16
        %s534 = sor.u32 %s517, %s533
        %v535 = vstv %s534
        %v537 = vmul.bf16 %v532, %v535
        %v538 = vld [vmem:[%s468] sm:$0xff]
        %v539 = vld [vmem:[%s468 + $0x8] sm:$0xff]
        %v540 = vld [vmem:[%s468 + $0x10] sm:$0xff]
        %v541 = vld [vmem:[%s468 + $0x18] sm:$0xff]
        %v542 = vld [vmem:[%s468 + $0x20] sm:$0xff]
        %v543 = vld [vmem:[%s468 + $0x28] sm:$0xff]
        %v544 = vld [vmem:[%s468 + $0x30] sm:$0xff]
        %v545 = vld [vmem:[%s468 + $0x38] sm:$0xff]
        %v546 = vld [vmem:[%s468 + $0x40] sm:$0xff]
        %v547 = vld [vmem:[%s468 + $0x48] sm:$0xff]
        %v548 = vld [vmem:[%s468 + $0x50] sm:$0xff]
        %v549 = vld [vmem:[%s468 + $0x58] sm:$0xff]
        %v550 = vld [vmem:[%s468 + $0x60] sm:$0xff]
        %v551 = vld [vmem:[%s468 + $0x68] sm:$0xff]
        %v552 = vld [vmem:[%s468 + $0x70] sm:$0xff]
        %v553 = vld [vmem:[%s468 + $0x78] sm:$0xff]
        %v554 = vld [vmem:[%s468 + $0x80] sm:$0xff]
        %v555 = vld [vmem:[%s468 + $0x88] sm:$0xff]
        %v556 = vld [vmem:[%s468 + $0x90] sm:$0xff]
        %v557 = vld [vmem:[%s468 + $0x98] sm:$0xff]
        %v558 = vld [vmem:[%s468 + $0xa0] sm:$0xff]
        %v559 = vld [vmem:[%s468 + $0xa8] sm:$0xff]
        %v560 = vld [vmem:[%s468 + $0xb0] sm:$0xff]
        %v561 = vld [vmem:[%s468 + $0xb8] sm:$0xff]
        %v562 = vld [vmem:[%s468 + $0xc0] sm:$0xff]
        %v563 = vld [vmem:[%s468 + $0xc8] sm:$0xff]
        %v564 = vld [vmem:[%s468 + $0xd0] sm:$0xff]
        %v565 = vld [vmem:[%s468 + $0xd8] sm:$0xff]
        %v566 = vld [vmem:[%s468 + $0xe0] sm:$0xff]
        %v567 = vld [vmem:[%s468 + $0xe8] sm:$0xff]
        %v568 = vld [vmem:[%s468 + $0xf0] sm:$0xff]
        %v569 = vld [vmem:[%s468 + $0xf8] sm:$0xff]
        %v570 = vpack.c.bf16 %v539, %v538
        %v571 = vpack.c.bf16 %v541, %v540
        %v572 = vpack.c.bf16 %v543, %v542
        %v573 = vpack.c.bf16 %v545, %v544
        %v574 = vpack.c.bf16 %v547, %v546
        %v575 = vpack.c.bf16 %v549, %v548
        %v576 = vpack.c.bf16 %v551, %v550
        %v577 = vpack.c.bf16 %v553, %v552
        %v578 = vpack.c.bf16 %v555, %v554
        %v579 = vpack.c.bf16 %v557, %v556
        %v580 = vpack.c.bf16 %v559, %v558
        %v581 = vpack.c.bf16 %v561, %v560
        %v582 = vpack.c.bf16 %v563, %v562
        %v583 = vpack.c.bf16 %v565, %v564
        %v584 = vpack.c.bf16 %v567, %v566
        %v585 = vpack.c.bf16 %v569, %v568
        %v586 = vld [vmem:[%s499] sm:$0xff]
        %v587 = vld [vmem:[%s499 + $0x8] sm:$0xff]
        %v588 = vpack.c.bf16 %v587, %v586
        %s589 = sshll.u32 %s529, 16
        %s590 = sor.u32 %s529, %s589
        %v591 = vstv %s590
        %v593 = vmul.bf16 %v588, %v591
        %v595 = vshrl.u32 %v537, 16
        %v597 = vrot.slane %v595, 7
        %v598 = vshll.u32 %v537, 16
        %v600 = vor.u32 %v597, %v598
        %v602 = vshrl.u32 %v570, 16
        %v604 = vrot.slane %v602, 7
        %v605 = vshll.u32 %v570, 16
        %v607 = vor.u32 %v604, %v605
        %v609 = vshrl.u32 %v571, 16
        %v611 = vrot.slane %v609, 7
        %v612 = vshll.u32 %v571, 16
        %v614 = vor.u32 %v611, %v612
        %v616 = vshrl.u32 %v572, 16
        %v618 = vrot.slane %v616, 7
        %v619 = vshll.u32 %v572, 16
        %v621 = vor.u32 %v618, %v619
        %v623 = vshrl.u32 %v573, 16
        %v625 = vrot.slane %v623, 7
        %v626 = vshll.u32 %v573, 16
        %v628 = vor.u32 %v625, %v626
        %v630 = vshrl.u32 %v574, 16
        %v632 = vrot.slane %v630, 7
        %v633 = vshll.u32 %v574, 16
        %v635 = vor.u32 %v632, %v633
        %v637 = vshrl.u32 %v575, 16
        %v639 = vrot.slane %v637, 7
        %v640 = vshll.u32 %v575, 16
        %v642 = vor.u32 %v639, %v640
        %v644 = vshrl.u32 %v576, 16
        %v646 = vrot.slane %v644, 7
        %v647 = vshll.u32 %v576, 16
        %v649 = vor.u32 %v646, %v647
        %v651 = vshrl.u32 %v577, 16
        %v653 = vrot.slane %v651, 7
        %v654 = vshll.u32 %v577, 16
        %v656 = vor.u32 %v653, %v654
        %v658 = vshrl.u32 %v578, 16
        %v660 = vrot.slane %v658, 7
        %v661 = vshll.u32 %v578, 16
        %v663 = vor.u32 %v660, %v661
        %v665 = vshrl.u32 %v579, 16
        %v667 = vrot.slane %v665, 7
        %v668 = vshll.u32 %v579, 16
        %v670 = vor.u32 %v667, %v668
        %v672 = vshrl.u32 %v580, 16
        %v674 = vrot.slane %v672, 7
        %v675 = vshll.u32 %v580, 16
        %v677 = vor.u32 %v674, %v675
        %v679 = vshrl.u32 %v581, 16
        %v681 = vrot.slane %v679, 7
        %v682 = vshll.u32 %v581, 16
        %v684 = vor.u32 %v681, %v682
        %v686 = vshrl.u32 %v582, 16
        %v688 = vrot.slane %v686, 7
        %v689 = vshll.u32 %v582, 16
        %v691 = vor.u32 %v688, %v689
        %v693 = vshrl.u32 %v583, 16
        %v695 = vrot.slane %v693, 7
        %v696 = vshll.u32 %v583, 16
        %v698 = vor.u32 %v695, %v696
        %v700 = vshrl.u32 %v584, 16
        %v702 = vrot.slane %v700, 7
        %v703 = vshll.u32 %v584, 16
        %v705 = vor.u32 %v702, %v703
        %v707 = vshrl.u32 %v585, 16
        %v709 = vrot.slane %v707, 7
        %v710 = vshll.u32 %v585, 16
        %v712 = vor.u32 %v709, %v710
        %v714 = vshrl.u32 %v593, 16
        %v716 = vrot.slane %v714, 7
        %v717 = vshll.u32 %v593, 16
        %v719 = vor.u32 %v716, %v717
        %vm756 = vcmask 1040384
        %vm757 = vsmask.f32 256
        %vm758 = vmand %vm756, %vm757
        %v759 = vsel %vm758, 0, %v600
        %v760 = vsel %vm758, 0, %v607
        %v761 = vsel %vm758, 0, %v614
        %v762 = vsel %vm758, 0, %v621
        %v763 = vsel %vm758, 0, %v628
        %v764 = vsel %vm758, 0, %v635
        %v765 = vsel %vm758, 0, %v642
        %v766 = vsel %vm758, 0, %v649
        %v767 = vsel %vm758, 0, %v656
        %v768 = vsel %vm758, 0, %v663
        %v769 = vsel %vm758, 0, %v670
        %v770 = vsel %vm758, 0, %v677
        %v771 = vsel %vm758, 0, %v684
        %v772 = vsel %vm758, 0, %v691
        %v773 = vsel %vm758, 0, %v698
        %v774 = vsel %vm758, 0, %v705
        %v775 = vsel %vm758, 0, %v712
        %v776 = vsel %vm758, 0, %v719
        %v777 = vsel %vm758, %v597, 0
        %v778 = vsel %vm758, %v604, 0
        %v779 = vsel %vm758, %v611, 0
        %v780 = vsel %vm758, %v618, 0
        %v781 = vsel %vm758, %v625, 0
        %v782 = vsel %vm758, %v632, 0
        %v783 = vsel %vm758, %v639, 0
        %v784 = vsel %vm758, %v646, 0
        %v785 = vsel %vm758, %v653, 0
        %v786 = vsel %vm758, %v660, 0
        %v787 = vsel %vm758, %v667, 0
        %v788 = vsel %vm758, %v674, 0
        %v789 = vsel %vm758, %v681, 0
        %v790 = vsel %vm758, %v688, 0
        %v791 = vsel %vm758, %v695, 0
        %v792 = vsel %vm758, %v702, 0
        %v793 = vsel %vm758, %v709, 0
        %v794 = vsel %vm758, %v716, 0
        %vm795 = vsmask.f32 7424
        %v797 = vshrl.u32 %v759, 16
        %v799 = vshll.u32 %v759, 16
        %v801 = vrot.slane %v799, 1
        %v802 = vor.u32 %v797, %v801
        %v804 = vshll.u32 %v777, 16
        %v806 = vrot.slane %v804, 1
        %v807 = vsel %vm795, %v802, %v806
        %v809 = vshrl.u32 %v760, 16
        %v811 = vshll.u32 %v760, 16
        %v813 = vrot.slane %v811, 1
        %v814 = vor.u32 %v809, %v813
        %v816 = vshll.u32 %v778, 16
        %v818 = vrot.slane %v816, 1
        %v819 = vsel %vm795, %v814, %v818
        %v821 = vshrl.u32 %v761, 16
        %v823 = vshll.u32 %v761, 16
        %v825 = vrot.slane %v823, 1
        %v826 = vor.u32 %v821, %v825
        %v828 = vshll.u32 %v779, 16
        %v830 = vrot.slane %v828, 1
        %v831 = vsel %vm795, %v826, %v830
        %v833 = vshrl.u32 %v762, 16
        %v835 = vshll.u32 %v762, 16
        %v837 = vrot.slane %v835, 1
        %v838 = vor.u32 %v833, %v837
        %v840 = vshll.u32 %v780, 16
        %v842 = vrot.slane %v840, 1
        %v843 = vsel %vm795, %v838, %v842
        %v845 = vshrl.u32 %v763, 16
        %v847 = vshll.u32 %v763, 16
        %v849 = vrot.slane %v847, 1
        %v850 = vor.u32 %v845, %v849
        %v852 = vshll.u32 %v781, 16
        %v854 = vrot.slane %v852, 1
        %v855 = vsel %vm795, %v850, %v854
        %v857 = vshrl.u32 %v764, 16
        %v859 = vshll.u32 %v764, 16
        %v861 = vrot.slane %v859, 1
        %v862 = vor.u32 %v857, %v861
        %v864 = vshll.u32 %v782, 16
        %v866 = vrot.slane %v864, 1
        %v867 = vsel %vm795, %v862, %v866
        %v869 = vshrl.u32 %v765, 16
        %v871 = vshll.u32 %v765, 16
        %v873 = vrot.slane %v871, 1
        %v874 = vor.u32 %v869, %v873
        %v876 = vshll.u32 %v783, 16
        %v878 = vrot.slane %v876, 1
        %v879 = vsel %vm795, %v874, %v878
        %v881 = vshrl.u32 %v766, 16
        %v883 = vshll.u32 %v766, 16
        %v885 = vrot.slane %v883, 1
        %v886 = vor.u32 %v881, %v885
        %v888 = vshll.u32 %v784, 16
        %v890 = vrot.slane %v888, 1
        %v891 = vsel %vm795, %v886, %v890
        %v893 = vshrl.u32 %v767, 16
        %v895 = vshll.u32 %v767, 16
        %v897 = vrot.slane %v895, 1
        %v898 = vor.u32 %v893, %v897
        %v900 = vshll.u32 %v785, 16
        %v902 = vrot.slane %v900, 1
        %v903 = vsel %vm795, %v898, %v902
        %v905 = vshrl.u32 %v768, 16
        %v907 = vshll.u32 %v768, 16
        %v909 = vrot.slane %v907, 1
        %v910 = vor.u32 %v905, %v909
        %v912 = vshll.u32 %v786, 16
        %v914 = vrot.slane %v912, 1
        %v915 = vsel %vm795, %v910, %v914
        %v917 = vshrl.u32 %v769, 16
        %v919 = vshll.u32 %v769, 16
        %v921 = vrot.slane %v919, 1
        %v922 = vor.u32 %v917, %v921
        %v924 = vshll.u32 %v787, 16
        %v926 = vrot.slane %v924, 1
        %v927 = vsel %vm795, %v922, %v926
        %v929 = vshrl.u32 %v770, 16
        %v931 = vshll.u32 %v770, 16
        %v933 = vrot.slane %v931, 1
        %v934 = vor.u32 %v929, %v933
        %v936 = vshll.u32 %v788, 16
        %v938 = vrot.slane %v936, 1
        %v939 = vsel %vm795, %v934, %v938
        %v941 = vshrl.u32 %v771, 16
        %v943 = vshll.u32 %v771, 16
        %v945 = vrot.slane %v943, 1
        %v946 = vor.u32 %v941, %v945
        %v948 = vshll.u32 %v789, 16
        %v950 = vrot.slane %v948, 1
        %v951 = vsel %vm795, %v946, %v950
        %v953 = vshrl.u32 %v772, 16
        %v955 = vshll.u32 %v772, 16
        %v957 = vrot.slane %v955, 1
        %v958 = vor.u32 %v953, %v957
        %v960 = vshll.u32 %v790, 16
        %v962 = vrot.slane %v960, 1
        %v963 = vsel %vm795, %v958, %v962
        %v965 = vshrl.u32 %v773, 16
        %v967 = vshll.u32 %v773, 16
        %v969 = vrot.slane %v967, 1
        %v970 = vor.u32 %v965, %v969
        %v972 = vshll.u32 %v791, 16
        %v974 = vrot.slane %v972, 1
        %v975 = vsel %vm795, %v970, %v974
        %v977 = vshrl.u32 %v774, 16
        %v979 = vshll.u32 %v774, 16
        %v981 = vrot.slane %v979, 1
        %v982 = vor.u32 %v977, %v981
        %v984 = vshll.u32 %v792, 16
        %v986 = vrot.slane %v984, 1
        %v987 = vsel %vm795, %v982, %v986
        %988 = vrot.lane.b32.xlu0 %v807, 4
        %v989 = vpop.permute.xlu0 %988
        %990 = vrot.lane.b32.xlu0 %v819, 4
        %v991 = vpop.permute.xlu0 %990
        %992 = vrot.lane.b32.xlu0 %v831, 4
        %v993 = vpop.permute.xlu0 %992
        %994 = vrot.lane.b32.xlu0 %v843, 4
        %v995 = vpop.permute.xlu0 %994
        %996 = vrot.lane.b32.xlu0 %v855, 4
        %v997 = vpop.permute.xlu0 %996
        %998 = vrot.lane.b32.xlu0 %v867, 4
        %v999 = vpop.permute.xlu0 %998
        %1000 = vrot.lane.b32.xlu0 %v879, 4
        %v1001 = vpop.permute.xlu0 %1000
        %1002 = vrot.lane.b32.xlu0 %v891, 4
        %v1003 = vpop.permute.xlu0 %1002
        %1004 = vrot.lane.b32.xlu0 %v903, 4
        %v1005 = vpop.permute.xlu0 %1004
        %1006 = vrot.lane.b32.xlu0 %v915, 4
        %v1007 = vpop.permute.xlu0 %1006
        %1008 = vrot.lane.b32.xlu0 %v927, 4
        %v1009 = vpop.permute.xlu0 %1008
        %1010 = vrot.lane.b32.xlu0 %v939, 4
        %v1011 = vpop.permute.xlu0 %1010
        %1012 = vrot.lane.b32.xlu0 %v951, 4
        %v1013 = vpop.permute.xlu0 %1012
        %1014 = vrot.lane.b32.xlu0 %v963, 4
        %v1015 = vpop.permute.xlu0 %1014
        %1016 = vrot.lane.b32.xlu0 %v975, 4
        %v1017 = vpop.permute.xlu0 %1016
        %1018 = vrot.lane.b32.xlu0 %v987, 4
        %v1019 = vpop.permute.xlu0 %1018
        %vm1052 = vcmask 1046528
        %v1053 = vrot.slane %v759, 1
        %v1054 = vrot.slane %v777, 1
        %v1055 = vsel %vm1052, %v1053, %v1054
        %v1056 = vrot.slane %v760, 1
        %v1057 = vrot.slane %v778, 1
        %v1058 = vsel %vm1052, %v1056, %v1057
        %v1059 = vrot.slane %v761, 1
        %v1060 = vrot.slane %v779, 1
        %v1061 = vsel %vm1052, %v1059, %v1060
        %v1062 = vrot.slane %v762, 1
        %v1063 = vrot.slane %v780, 1
        %v1064 = vsel %vm1052, %v1062, %v1063
        %v1065 = vrot.slane %v763, 1
        %v1066 = vrot.slane %v781, 1
        %v1067 = vsel %vm1052, %v1065, %v1066
        %v1068 = vrot.slane %v764, 1
        %v1069 = vrot.slane %v782, 1
        %v1070 = vsel %vm1052, %v1068, %v1069
        %v1071 = vrot.slane %v765, 1
        %v1072 = vrot.slane %v783, 1
        %v1073 = vsel %vm1052, %v1071, %v1072
        %v1074 = vrot.slane %v766, 1
        %v1075 = vrot.slane %v784, 1
        %v1076 = vsel %vm1052, %v1074, %v1075
        %v1077 = vrot.slane %v767, 1
        %v1078 = vrot.slane %v785, 1
        %v1079 = vsel %vm1052, %v1077, %v1078
        %v1080 = vrot.slane %v768, 1
        %v1081 = vrot.slane %v786, 1
        %v1082 = vsel %vm1052, %v1080, %v1081
        %v1083 = vrot.slane %v769, 1
        %v1084 = vrot.slane %v787, 1
        %v1085 = vsel %vm1052, %v1083, %v1084
        %v1086 = vrot.slane %v770, 1
        %v1087 = vrot.slane %v788, 1
        %v1088 = vsel %vm1052, %v1086, %v1087
        %v1089 = vrot.slane %v771, 1
        %v1090 = vrot.slane %v789, 1
        %v1091 = vsel %vm1052, %v1089, %v1090
        %v1092 = vrot.slane %v772, 1
        %v1093 = vrot.slane %v790, 1
        %v1094 = vsel %vm1052, %v1092, %v1093
        %v1095 = vrot.slane %v773, 1
        %v1096 = vrot.slane %v791, 1
        %v1097 = vsel %vm1052, %v1095, %v1096
        %v1098 = vrot.slane %v774, 1
        %v1099 = vrot.slane %v792, 1
        %v1100 = vsel %vm1052, %v1098, %v1099
        %1101 = vrot.lane.b32.xlu0 %v1055, 8
        %v1102 = vpop.permute.xlu0 %1101
        %1103 = vrot.lane.b32.xlu0 %v1058, 8
        %v1104 = vpop.permute.xlu0 %1103
        %1105 = vrot.lane.b32.xlu0 %v1061, 8
        %v1106 = vpop.permute.xlu0 %1105
        %1107 = vrot.lane.b32.xlu0 %v1064, 8
        %v1108 = vpop.permute.xlu0 %1107
        %1109 = vrot.lane.b32.xlu0 %v1067, 8
        %v1110 = vpop.permute.xlu0 %1109
        %1111 = vrot.lane.b32.xlu0 %v1070, 8
        %v1112 = vpop.permute.xlu0 %1111
        %1113 = vrot.lane.b32.xlu0 %v1073, 8
        %v1114 = vpop.permute.xlu0 %1113
        %1115 = vrot.lane.b32.xlu0 %v1076, 8
        %v1116 = vpop.permute.xlu0 %1115
        %1117 = vrot.lane.b32.xlu0 %v1079, 8
        %v1118 = vpop.permute.xlu0 %1117
        %1119 = vrot.lane.b32.xlu0 %v1082, 8
        %v1120 = vpop.permute.xlu0 %1119
        %1121 = vrot.lane.b32.xlu0 %v1085, 8
        %v1122 = vpop.permute.xlu0 %1121
        %1123 = vrot.lane.b32.xlu0 %v1088, 8
        %v1124 = vpop.permute.xlu0 %1123
        %1125 = vrot.lane.b32.xlu0 %v1091, 8
        %v1126 = vpop.permute.xlu0 %1125
        %1127 = vrot.lane.b32.xlu0 %v1094, 8
        %v1128 = vpop.permute.xlu0 %1127
        %1129 = vrot.lane.b32.xlu0 %v1097, 8
        %v1130 = vpop.permute.xlu0 %1129
        %1131 = vrot.lane.b32.xlu0 %v1100, 8
        %v1132 = vpop.permute.xlu0 %1131
        %1134 = vrot.lane.b32.xlu0 %v760, 12
        %v1135 = vpop.permute.xlu0 %1134
        %1136 = vrot.lane.b32.xlu0 %v761, 12
        %v1137 = vpop.permute.xlu0 %1136
        %1138 = vrot.lane.b32.xlu0 %v762, 12
        %v1139 = vpop.permute.xlu0 %1138
        %1140 = vrot.lane.b32.xlu0 %v763, 12
        %v1141 = vpop.permute.xlu0 %1140
        %1142 = vrot.lane.b32.xlu0 %v764, 12
        %v1143 = vpop.permute.xlu0 %1142
        %1144 = vrot.lane.b32.xlu0 %v765, 12
        %v1145 = vpop.permute.xlu0 %1144
        %1146 = vrot.lane.b32.xlu0 %v766, 12
        %v1147 = vpop.permute.xlu0 %1146
        %1148 = vrot.lane.b32.xlu0 %v767, 12
        %v1149 = vpop.permute.xlu0 %1148
        %1150 = vrot.lane.b32.xlu0 %v768, 12
        %v1151 = vpop.permute.xlu0 %1150
        %1152 = vrot.lane.b32.xlu0 %v769, 12
        %v1153 = vpop.permute.xlu0 %1152
        %1154 = vrot.lane.b32.xlu0 %v770, 12
        %v1155 = vpop.permute.xlu0 %1154
        %1156 = vrot.lane.b32.xlu0 %v771, 12
        %v1157 = vpop.permute.xlu0 %1156
        %1158 = vrot.lane.b32.xlu0 %v772, 12
        %v1159 = vpop.permute.xlu0 %1158
        %1160 = vrot.lane.b32.xlu0 %v773, 12
        %v1161 = vpop.permute.xlu0 %1160
        %1162 = vrot.lane.b32.xlu0 %v774, 12
        %v1163 = vpop.permute.xlu0 %1162
        %1164 = vrot.lane.b32.xlu0 %v775, 12
        %v1165 = vpop.permute.xlu0 %1164
        %v1167 = vshrl.u32 %v775, 16
        %v1169 = vshll.u32 %v775, 16
        %v1171 = vrot.slane %v1169, 1
        %v1172 = vor.u32 %v1167, %v1171
        %v1174 = vshll.u32 %v793, 16
        %v1176 = vrot.slane %v1174, 1
        %v1177 = vsel %vm795, %v1172, %v1176
        %1178 = vrot.lane.b32.xlu0 %v819, 16
        %v1179 = vpop.permute.xlu0 %1178
        %1180 = vrot.lane.b32.xlu0 %v831, 16
        %v1181 = vpop.permute.xlu0 %1180
        %1182 = vrot.lane.b32.xlu0 %v843, 16
        %v1183 = vpop.permute.xlu0 %1182
        %1184 = vrot.lane.b32.xlu0 %v855, 16
        %v1185 = vpop.permute.xlu0 %1184
        %1186 = vrot.lane.b32.xlu0 %v867, 16
        %v1187 = vpop.permute.xlu0 %1186
        %1188 = vrot.lane.b32.xlu0 %v879, 16
        %v1189 = vpop.permute.xlu0 %1188
        %1190 = vrot.lane.b32.xlu0 %v891, 16
        %v1191 = vpop.permute.xlu0 %1190
        %1192 = vrot.lane.b32.xlu0 %v903, 16
        %v1193 = vpop.permute.xlu0 %1192
        %1194 = vrot.lane.b32.xlu0 %v915, 16
        %v1195 = vpop.permute.xlu0 %1194
        %1196 = vrot.lane.b32.xlu0 %v927, 16
        %v1197 = vpop.permute.xlu0 %1196
        %1198 = vrot.lane.b32.xlu0 %v939, 16
        %v1199 = vpop.permute.xlu0 %1198
        %1200 = vrot.lane.b32.xlu0 %v951, 16
        %v1201 = vpop.permute.xlu0 %1200
        %1202 = vrot.lane.b32.xlu0 %v963, 16
        %v1203 = vpop.permute.xlu0 %1202
        %1204 = vrot.lane.b32.xlu0 %v975, 16
        %v1205 = vpop.permute.xlu0 %1204
        %1206 = vrot.lane.b32.xlu0 %v987, 16
        %v1207 = vpop.permute.xlu0 %1206
        %1208 = vrot.lane.b32.xlu0 %v1177, 16
        %v1209 = vpop.permute.xlu0 %1208
        %v1211 = vrot.slane %v775, 1
        %v1212 = vrot.slane %v793, 1
        %v1213 = vsel %vm1052, %v1211, %v1212
        %1214 = vrot.lane.b32.xlu0 %v1058, 20
        %v1215 = vpop.permute.xlu0 %1214
        %1216 = vrot.lane.b32.xlu0 %v1061, 20
        %v1217 = vpop.permute.xlu0 %1216
        %1218 = vrot.lane.b32.xlu0 %v1064, 20
        %v1219 = vpop.permute.xlu0 %1218
        %1220 = vrot.lane.b32.xlu0 %v1067, 20
        %v1221 = vpop.permute.xlu0 %1220
        %1222 = vrot.lane.b32.xlu0 %v1070, 20
        %v1223 = vpop.permute.xlu0 %1222
        %1224 = vrot.lane.b32.xlu0 %v1073, 20
        %v1225 = vpop.permute.xlu0 %1224
        %1226 = vrot.lane.b32.xlu0 %v1076, 20
        %v1227 = vpop.permute.xlu0 %1226
        %1228 = vrot.lane.b32.xlu0 %v1079, 20
        %v1229 = vpop.permute.xlu0 %1228
        %1230 = vrot.lane.b32.xlu0 %v1082, 20
        %v1231 = vpop.permute.xlu0 %1230
        %1232 = vrot.lane.b32.xlu0 %v1085, 20
        %v1233 = vpop.permute.xlu0 %1232
        %1234 = vrot.lane.b32.xlu0 %v1088, 20
        %v1235 = vpop.permute.xlu0 %1234
        %1236 = vrot.lane.b32.xlu0 %v1091, 20
        %v1237 = vpop.permute.xlu0 %1236
        %1238 = vrot.lane.b32.xlu0 %v1094, 20
        %v1239 = vpop.permute.xlu0 %1238
        %1240 = vrot.lane.b32.xlu0 %v1097, 20
        %v1241 = vpop.permute.xlu0 %1240
        %1242 = vrot.lane.b32.xlu0 %v1100, 20
        %v1243 = vpop.permute.xlu0 %1242
        %1244 = vrot.lane.b32.xlu0 %v1213, 20
        %v1245 = vpop.permute.xlu0 %1244
        %1247 = vrot.lane.b32.xlu0 %v761, 24
        %v1248 = vpop.permute.xlu0 %1247
        %1249 = vrot.lane.b32.xlu0 %v762, 24
        %v1250 = vpop.permute.xlu0 %1249
        %1251 = vrot.lane.b32.xlu0 %v763, 24
        %v1252 = vpop.permute.xlu0 %1251
        %1253 = vrot.lane.b32.xlu0 %v764, 24
        %v1254 = vpop.permute.xlu0 %1253
        %1255 = vrot.lane.b32.xlu0 %v765, 24
        %v1256 = vpop.permute.xlu0 %1255
        %1257 = vrot.lane.b32.xlu0 %v766, 24
        %v1258 = vpop.permute.xlu0 %1257
        %1259 = vrot.lane.b32.xlu0 %v767, 24
        %v1260 = vpop.permute.xlu0 %1259
        %1261 = vrot.lane.b32.xlu0 %v768, 24
        %v1262 = vpop.permute.xlu0 %1261
        %1263 = vrot.lane.b32.xlu0 %v769, 24
        %v1264 = vpop.permute.xlu0 %1263
        %1265 = vrot.lane.b32.xlu0 %v770, 24
        %v1266 = vpop.permute.xlu0 %1265
        %1267 = vrot.lane.b32.xlu0 %v771, 24
        %v1268 = vpop.permute.xlu0 %1267
        %1269 = vrot.lane.b32.xlu0 %v772, 24
        %v1270 = vpop.permute.xlu0 %1269
        %1271 = vrot.lane.b32.xlu0 %v773, 24
        %v1272 = vpop.permute.xlu0 %1271
        %1273 = vrot.lane.b32.xlu0 %v774, 24
        %v1274 = vpop.permute.xlu0 %1273
        %1275 = vrot.lane.b32.xlu0 %v775, 24
        %v1276 = vpop.permute.xlu0 %1275
        %1277 = vrot.lane.b32.xlu0 %v776, 24
        %v1278 = vpop.permute.xlu0 %1277
        %v1280 = vshrl.u32 %v776, 16
        %v1282 = vshll.u32 %v776, 16
        %v1284 = vrot.slane %v1282, 1
        %v1285 = vor.u32 %v1280, %v1284
        %v1287 = vshll.u32 %v794, 16
        %v1289 = vrot.slane %v1287, 1
        %v1290 = vsel %vm795, %v1285, %v1289
        %1291 = vrot.lane.b32.xlu0 %v831, 28
        %v1292 = vpop.permute.xlu0 %1291
        %1293 = vrot.lane.b32.xlu0 %v843, 28
        %v1294 = vpop.permute.xlu0 %1293
        %1295 = vrot.lane.b32.xlu0 %v855, 28
        %v1296 = vpop.permute.xlu0 %1295
        %1297 = vrot.lane.b32.xlu0 %v867, 28
        %v1298 = vpop.permute.xlu0 %1297
        %1299 = vrot.lane.b32.xlu0 %v879, 28
        %v1300 = vpop.permute.xlu0 %1299
        %1301 = vrot.lane.b32.xlu0 %v891, 28
        %v1302 = vpop.permute.xlu0 %1301
        %1303 = vrot.lane.b32.xlu0 %v903, 28
        %v1304 = vpop.permute.xlu0 %1303
        %1305 = vrot.lane.b32.xlu0 %v915, 28
        %v1306 = vpop.permute.xlu0 %1305
        %1307 = vrot.lane.b32.xlu0 %v927, 28
        %v1308 = vpop.permute.xlu0 %1307
        %1309 = vrot.lane.b32.xlu0 %v939, 28
        %v1310 = vpop.permute.xlu0 %1309
        %1311 = vrot.lane.b32.xlu0 %v951, 28
        %v1312 = vpop.permute.xlu0 %1311
        %1313 = vrot.lane.b32.xlu0 %v963, 28
        %v1314 = vpop.permute.xlu0 %1313
        %1315 = vrot.lane.b32.xlu0 %v975, 28
        %v1316 = vpop.permute.xlu0 %1315
        %1317 = vrot.lane.b32.xlu0 %v987, 28
        %v1318 = vpop.permute.xlu0 %1317
        %1319 = vrot.lane.b32.xlu0 %v1177, 28
        %v1320 = vpop.permute.xlu0 %1319
        %1321 = vrot.lane.b32.xlu0 %v1290, 28
        %v1322 = vpop.permute.xlu0 %1321
        %v1324 = vrot.slane %v776, 1
        %v1325 = vrot.slane %v794, 1
        %v1326 = vsel %vm1052, %v1324, %v1325
        %1327 = vrot.lane.b32.xlu0 %v1061, 32
        %v1328 = vpop.permute.xlu0 %1327
        %1329 = vrot.lane.b32.xlu0 %v1064, 32
        %v1330 = vpop.permute.xlu0 %1329
        %1331 = vrot.lane.b32.xlu0 %v1067, 32
        %v1332 = vpop.permute.xlu0 %1331
        %1333 = vrot.lane.b32.xlu0 %v1070, 32
        %v1334 = vpop.permute.xlu0 %1333
        %1335 = vrot.lane.b32.xlu0 %v1073, 32
        %v1336 = vpop.permute.xlu0 %1335
        %1337 = vrot.lane.b32.xlu0 %v1076, 32
        %v1338 = vpop.permute.xlu0 %1337
        %1339 = vrot.lane.b32.xlu0 %v1079, 32
        %v1340 = vpop.permute.xlu0 %1339
        %1341 = vrot.lane.b32.xlu0 %v1082, 32
        %v1342 = vpop.permute.xlu0 %1341
        %1343 = vrot.lane.b32.xlu0 %v1085, 32
        %v1344 = vpop.permute.xlu0 %1343
        %1345 = vrot.lane.b32.xlu0 %v1088, 32
        %v1346 = vpop.permute.xlu0 %1345
        %1347 = vrot.lane.b32.xlu0 %v1091, 32
        %v1348 = vpop.permute.xlu0 %1347
        %1349 = vrot.lane.b32.xlu0 %v1094, 32
        %v1350 = vpop.permute.xlu0 %1349
        %1351 = vrot.lane.b32.xlu0 %v1097, 32
        %v1352 = vpop.permute.xlu0 %1351
        %1353 = vrot.lane.b32.xlu0 %v1100, 32
        %v1354 = vpop.permute.xlu0 %1353
        %1355 = vrot.lane.b32.xlu0 %v1213, 32
        %v1356 = vpop.permute.xlu0 %1355
        %1357 = vrot.lane.b32.xlu0 %v1326, 32
        %v1358 = vpop.permute.xlu0 %1357
        %vm1359 = vcmask 31744
        %v1361 = vsel %vm1359, %v759, %v989
        %v1363 = vsel %vm1359, %v760, %v991
        %v1365 = vsel %vm1359, %v761, %v993
        %v1367 = vsel %vm1359, %v762, %v995
        %v1369 = vsel %vm1359, %v763, %v997
        %v1371 = vsel %vm1359, %v764, %v999
        %v1373 = vsel %vm1359, %v765, %v1001
        %v1375 = vsel %vm1359, %v766, %v1003
        %v1377 = vsel %vm1359, %v767, %v1005
        %v1379 = vsel %vm1359, %v768, %v1007
        %v1381 = vsel %vm1359, %v769, %v1009
        %v1383 = vsel %vm1359, %v770, %v1011
        %v1385 = vsel %vm1359, %v771, %v1013
        %v1387 = vsel %vm1359, %v772, %v1015
        %v1389 = vsel %vm1359, %v773, %v1017
        %v1391 = vsel %vm1359, %v774, %v1019
        %vm1392 = vcmask 64512
        %v1394 = vsel %vm1392, %v1361, %v1102
        %v1396 = vsel %vm1392, %v1363, %v1104
        %v1398 = vsel %vm1392, %v1365, %v1106
        %v1400 = vsel %vm1392, %v1367, %v1108
        %v1402 = vsel %vm1392, %v1369, %v1110
        %v1404 = vsel %vm1392, %v1371, %v1112
        %v1406 = vsel %vm1392, %v1373, %v1114
        %v1408 = vsel %vm1392, %v1375, %v1116
        %v1410 = vsel %vm1392, %v1377, %v1118
        %v1412 = vsel %vm1392, %v1379, %v1120
        %v1414 = vsel %vm1392, %v1381, %v1122
        %v1416 = vsel %vm1392, %v1383, %v1124
        %v1418 = vsel %vm1392, %v1385, %v1126
        %v1420 = vsel %vm1392, %v1387, %v1128
        %v1422 = vsel %vm1392, %v1389, %v1130
        %v1424 = vsel %vm1392, %v1391, %v1132
        %vm1425 = vcmask 97280
        %v1427 = vsel %vm1425, %v1394, %v1135
        %v1429 = vsel %vm1425, %v1396, %v1137
        %v1431 = vsel %vm1425, %v1398, %v1139
        %v1433 = vsel %vm1425, %v1400, %v1141
        %v1435 = vsel %vm1425, %v1402, %v1143
        %v1437 = vsel %vm1425, %v1404, %v1145
        %v1439 = vsel %vm1425, %v1406, %v1147
        %v1441 = vsel %vm1425, %v1408, %v1149
        %v1443 = vsel %vm1425, %v1410, %v1151
        %v1445 = vsel %vm1425, %v1412, %v1153
        %v1447 = vsel %vm1425, %v1414, %v1155
        %v1449 = vsel %vm1425, %v1416, %v1157
        %v1451 = vsel %vm1425, %v1418, %v1159
        %v1453 = vsel %vm1425, %v1420, %v1161
        %v1455 = vsel %vm1425, %v1422, %v1163
        %v1457 = vsel %vm1425, %v1424, %v1165
        %vm1458 = vcmask 130048
        %v1460 = vsel %vm1458, %v1427, %v1179
        %v1462 = vsel %vm1458, %v1429, %v1181
        %v1464 = vsel %vm1458, %v1431, %v1183
        %v1466 = vsel %vm1458, %v1433, %v1185
        %v1468 = vsel %vm1458, %v1435, %v1187
        %v1470 = vsel %vm1458, %v1437, %v1189
        %v1472 = vsel %vm1458, %v1439, %v1191
        %v1474 = vsel %vm1458, %v1441, %v1193
        %v1476 = vsel %vm1458, %v1443, %v1195
        %v1478 = vsel %vm1458, %v1445, %v1197
        %v1480 = vsel %vm1458, %v1447, %v1199
        %v1482 = vsel %vm1458, %v1449, %v1201
        %v1484 = vsel %vm1458, %v1451, %v1203
        %v1486 = vsel %vm1458, %v1453, %v1205
        %v1488 = vsel %vm1458, %v1455, %v1207
        %v1490 = vsel %vm1458, %v1457, %v1209
        %vm1491 = vcmask 162816
        %v1493 = vsel %vm1491, %v1460, %v1215
        %v1495 = vsel %vm1491, %v1462, %v1217
        %v1497 = vsel %vm1491, %v1464, %v1219
        %v1499 = vsel %vm1491, %v1466, %v1221
        %v1501 = vsel %vm1491, %v1468, %v1223
        %v1503 = vsel %vm1491, %v1470, %v1225
        %v1505 = vsel %vm1491, %v1472, %v1227
        %v1507 = vsel %vm1491, %v1474, %v1229
        %v1509 = vsel %vm1491, %v1476, %v1231
        %v1511 = vsel %vm1491, %v1478, %v1233
        %v1513 = vsel %vm1491, %v1480, %v1235
        %v1515 = vsel %vm1491, %v1482, %v1237
        %v1517 = vsel %vm1491, %v1484, %v1239
        %v1519 = vsel %vm1491, %v1486, %v1241
        %v1521 = vsel %vm1491, %v1488, %v1243
        %v1523 = vsel %vm1491, %v1490, %v1245
        %vm1524 = vcmask 195584
        %v1526 = vsel %vm1524, %v1493, %v1248
        %v1528 = vsel %vm1524, %v1495, %v1250
        %v1530 = vsel %vm1524, %v1497, %v1252
        %v1532 = vsel %vm1524, %v1499, %v1254
        %v1534 = vsel %vm1524, %v1501, %v1256
        %v1536 = vsel %vm1524, %v1503, %v1258
        %v1538 = vsel %vm1524, %v1505, %v1260
        %v1540 = vsel %vm1524, %v1507, %v1262
        %v1542 = vsel %vm1524, %v1509, %v1264
        %v1544 = vsel %vm1524, %v1511, %v1266
        %v1546 = vsel %vm1524, %v1513, %v1268
        %v1548 = vsel %vm1524, %v1515, %v1270
        %v1550 = vsel %vm1524, %v1517, %v1272
        %v1552 = vsel %vm1524, %v1519, %v1274
        %v1554 = vsel %vm1524, %v1521, %v1276
        %v1556 = vsel %vm1524, %v1523, %v1278
        %vm1557 = vcmask 228352
        %v1559 = vsel %vm1557, %v1526, %v1292
        %v1561 = vsel %vm1557, %v1528, %v1294
        %v1563 = vsel %vm1557, %v1530, %v1296
        %v1565 = vsel %vm1557, %v1532, %v1298
        %v1567 = vsel %vm1557, %v1534, %v1300
        %v1569 = vsel %vm1557, %v1536, %v1302
        %v1571 = vsel %vm1557, %v1538, %v1304
        %v1573 = vsel %vm1557, %v1540, %v1306
        %v1575 = vsel %vm1557, %v1542, %v1308
        %v1577 = vsel %vm1557, %v1544, %v1310
        %v1579 = vsel %vm1557, %v1546, %v1312
        %v1581 = vsel %vm1557, %v1548, %v1314
        %v1583 = vsel %vm1557, %v1550, %v1316
        %v1585 = vsel %vm1557, %v1552, %v1318
        %v1587 = vsel %vm1557, %v1554, %v1320
        %v1589 = vsel %vm1557, %v1556, %v1322
        %vm1590 = vcmask 261120
        %v1592 = vsel %vm1590, %v1559, %v1328
        %v1594 = vsel %vm1590, %v1561, %v1330
        %v1596 = vsel %vm1590, %v1563, %v1332
        %v1598 = vsel %vm1590, %v1565, %v1334
        %v1600 = vsel %vm1590, %v1567, %v1336
        %v1602 = vsel %vm1590, %v1569, %v1338
        %v1604 = vsel %vm1590, %v1571, %v1340
        %v1606 = vsel %vm1590, %v1573, %v1342
        %v1608 = vsel %vm1590, %v1575, %v1344
        %v1610 = vsel %vm1590, %v1577, %v1346
        %v1612 = vsel %vm1590, %v1579, %v1348
        %v1614 = vsel %vm1590, %v1581, %v1350
        %v1616 = vsel %vm1590, %v1583, %v1352
        %v1618 = vsel %vm1590, %v1585, %v1354
        %v1620 = vsel %vm1590, %v1587, %v1356
        %v1622 = vsel %vm1590, %v1589, %v1358
        %v1623 = vld [vmem:[%s5] sm:$0xf]
        %v1624 = vld [vmem:[%s5 + $0x4] sm:$0xf]
        %v1625 = vld [vmem:[%s5 + $0x8] sm:$0xf]
        %v1626 = vld [vmem:[%s5 + $0xc] sm:$0xf]
        %v1627 = vld [vmem:[%s5 + $0x10] sm:$0x3]
        %v1628 = vld [vmem:[%s6] sm:$0x1]
        %v1630 = vlaneseq
        %v1631 = vshrl.u32 %v1630, 7
        %v1632 = vsub.s32 0, %v1631
        %v1633 = vrot.slane %v1628, %v1632
        %v1640 = vunpack.c.l.b16 %v1623
        %v1641 = vunpack.c.l.b16 %v1624
        %v1642 = vunpack.c.l.b16 %v1625
        %v1643 = vunpack.c.l.b16 %v1626
        %v1644 = vunpack.c.l.b16 %v1627
        %v1645 = vpack.c.b16 %v1641, %v1640
        %v1646 = vpack.c.b16 %v1643, %v1642
        %v1647 = vpack.c.b16 %v1644, %v1644
        %vm1650 = vcmask 293888
        %v1651 = vsel %vm1650, %v1592, 0
        %v1653 = vsel %vm1650, %v1594, 0
        %v1655 = vsel %vm1650, %v1596, 0
        %v1657 = vsel %vm1650, %v1598, 0
        %v1659 = vsel %vm1650, %v1600, 0
        %v1661 = vsel %vm1650, %v1602, 0
        %v1663 = vsel %vm1650, %v1604, 0
        %v1665 = vsel %vm1650, %v1606, 0
        %v1667 = vsel %vm1650, %v1608, 0
        %v1669 = vsel %vm1650, %v1610, 0
        %v1671 = vsel %vm1650, %v1612, 0
        %v1673 = vsel %vm1650, %v1614, 0
        %v1675 = vsel %vm1650, %v1616, 0
        %v1677 = vsel %vm1650, %v1618, 0
        %v1679 = vsel %vm1650, %v1620, 0
        %v1681 = vsel %vm1650, %v1622, 0
        %vm1683 = vcmask 1041408
        %v1685 = vsel %vm1683, %v1647, 0
        %1687 = vmatprep.subr.bf16.mxu0 0
        %1688 = vmatpush1.bf16.msra.mxu0 %v1645
        %1689 = vmatprep.subr.bf16.mxu0 0
        %1690 = vmatpush1.bf16.msra.mxu0 %v1646
        %1691 = vmatprep.subr.bf16.mxu0 0
        %1692 = vmatpush1.bf16.msra.mxu0 %v1685
        %1693 = vmatprep.subr.bf16.mxu0 0
        %1694 = vmatpush1.bf16.msra.mxu0 0
        %1695 = vmatprep.subr.bf16.mxu0 0
        %1696 = vmatpush1.bf16.msra.mxu0 0
        %1697 = vmatprep.subr.bf16.mxu0 0
        %1698 = vmatpush1.bf16.msra.mxu0 0
        %1699 = vmatprep.subr.bf16.mxu0 0
        %1700 = vmatpush1.bf16.msra.mxu0 0
        %1701 = vmatprep.subr.bf16.mxu0 0
        %1702 = vmatpush1.bf16.msra.mxu0 0
        %1703 = vmatprep.subr.bf16.mxu0 0
        %1704 = vmatpush1.bf16.msra.mxu0 0
        %1705 = vmatprep.subr.bf16.mxu0 0
        %1706 = vmatpush1.bf16.msra.mxu0 0
        %1707 = vmatprep.subr.bf16.mxu0 0
        %1708 = vmatpush1.bf16.msra.mxu0 0
        %1709 = vmatprep.subr.bf16.mxu0 0
        %1710 = vmatpush1.bf16.msra.mxu0 0
        %1711 = vmatprep.subr.bf16.mxu0 0
        %1712 = vmatpush1.bf16.msra.mxu0 0
        %1713 = vmatprep.subr.bf16.mxu0 0
        %1714 = vmatpush1.bf16.msra.mxu0 0
        %1715 = vmatprep.subr.bf16.mxu0 0
        %1716 = vmatpush1.bf16.msra.mxu0 0
        %1717 = vmatprep.subr.bf16.mxu0 0
        %1718 = vmatpush1.bf16.msra.mxu0 0
        %1719 = vmatprep.mubr.bf16.mxu0 0
        %1720 = vmatmul.mubr.bf16.gmra.mrb[0].mxu0 %v1651
        %v1721 = vpop.f32.mrb[0].mxu0
        %v1722 = vadd.f32 %v1633, %v1721
        %v1723 = vpop.f32.mrb[0].mxu0
        %v1724 = vpop.f32.mrb[0].mxu0
        %v1725 = vadd.f32 %v1633, %v1724
        %v1726 = vpop.f32.mrb[0].mxu0
        %1727 = vmatprep.mubr.bf16.mxu0 0
        %1728 = vmatmul.mubr.bf16.gmra.mrb[0].mxu0 %v1653
        %v1729 = vpop.f32.mrb[0].mxu0
        %v1730 = vadd.f32 %v1633, %v1729
        %v1731 = vpop.f32.mrb[0].mxu0
        %v1732 = vpop.f32.mrb[0].mxu0
        %v1733 = vadd.f32 %v1633, %v1732
        %v1734 = vpop.f32.mrb[0].mxu0
        %1735 = vmatprep.mubr.bf16.mxu0 0
        %1736 = vmatmul.mubr.bf16.gmra.mrb[0].mxu0 %v1655
        %v1737 = vpop.f32.mrb[0].mxu0
        %v1738 = vadd.f32 %v1633, %v1737
        %v1739 = vpop.f32.mrb[0].mxu0
        %v1740 = vpop.f32.mrb[0].mxu0
        %v1741 = vadd.f32 %v1633, %v1740
        %v1742 = vpop.f32.mrb[0].mxu0
        %1743 = vmatprep.mubr.bf16.mxu0 0
        %1744 = vmatmul.mubr.bf16.gmra.mrb[0].mxu0 %v1657
        %v1745 = vpop.f32.mrb[0].mxu0
        %v1746 = vadd.f32 %v1633, %v1745
        %v1747 = vpop.f32.mrb[0].mxu0
        %v1748 = vpop.f32.mrb[0].mxu0
        %v1749 = vadd.f32 %v1633, %v1748
        %v1750 = vpop.f32.mrb[0].mxu0
        %1751 = vmatprep.mubr.bf16.mxu0 0
        %1752 = vmatmul.mubr.bf16.gmra.mrb[0].mxu0 %v1659
        %v1753 = vpop.f32.mrb[0].mxu0
        %v1754 = vadd.f32 %v1633, %v1753
        %v1755 = vpop.f32.mrb[0].mxu0
        %v1756 = vpop.f32.mrb[0].mxu0
        %v1757 = vadd.f32 %v1633, %v1756
        %v1758 = vpop.f32.mrb[0].mxu0
        %1759 = vmatprep.mubr.bf16.mxu0 0
        %1760 = vmatmul.mubr.bf16.gmra.mrb[0].mxu0 %v1661
        %v1761 = vpop.f32.mrb[0].mxu0
        %v1762 = vadd.f32 %v1633, %v1761
        %v1763 = vpop.f32.mrb[0].mxu0
        %v1764 = vpop.f32.mrb[0].mxu0
        %v1765 = vadd.f32 %v1633, %v1764
        %v1766 = vpop.f32.mrb[0].mxu0
        %1767 = vmatprep.mubr.bf16.mxu0 0
        %1768 = vmatmul.mubr.bf16.gmra.mrb[0].mxu0 %v1663
        %v1769 = vpop.f32.mrb[0].mxu0
        %v1770 = vadd.f32 %v1633, %v1769
        %v1771 = vpop.f32.mrb[0].mxu0
        %v1772 = vpop.f32.mrb[0].mxu0
        %v1773 = vadd.f32 %v1633, %v1772
        %v1774 = vpop.f32.mrb[0].mxu0
        %1775 = vmatprep.mubr.bf16.mxu0 0
        %1776 = vmatmul.mubr.bf16.gmra.mrb[0].mxu0 %v1665
        %v1777 = vpop.f32.mrb[0].mxu0
        %v1778 = vadd.f32 %v1633, %v1777
        %v1779 = vpop.f32.mrb[0].mxu0
        %v1780 = vpop.f32.mrb[0].mxu0
        %v1781 = vadd.f32 %v1633, %v1780
        %v1782 = vpop.f32.mrb[0].mxu0
        %1783 = vmatprep.mubr.bf16.mxu0 0
        %1784 = vmatmul.mubr.bf16.gmra.mrb[0].mxu0 %v1667
        %v1785 = vpop.f32.mrb[0].mxu0
        %v1786 = vadd.f32 %v1633, %v1785
        %v1787 = vpop.f32.mrb[0].mxu0
        %v1788 = vpop.f32.mrb[0].mxu0
        %v1789 = vadd.f32 %v1633, %v1788
        %v1790 = vpop.f32.mrb[0].mxu0
        %1791 = vmatprep.mubr.bf16.mxu0 0
        %1792 = vmatmul.mubr.bf16.gmra.mrb[0].mxu0 %v1669
        %v1793 = vpop.f32.mrb[0].mxu0
        %v1794 = vadd.f32 %v1633, %v1793
        %v1795 = vpop.f32.mrb[0].mxu0
        %v1796 = vpop.f32.mrb[0].mxu0
        %v1797 = vadd.f32 %v1633, %v1796
        %v1798 = vpop.f32.mrb[0].mxu0
        %1799 = vmatprep.mubr.bf16.mxu0 0
        %1800 = vmatmul.mubr.bf16.gmra.mrb[0].mxu0 %v1671
        %v1801 = vpop.f32.mrb[0].mxu0
        %v1802 = vadd.f32 %v1633, %v1801
        %v1803 = vpop.f32.mrb[0].mxu0
        %v1804 = vpop.f32.mrb[0].mxu0
        %v1805 = vadd.f32 %v1633, %v1804
        %v1806 = vpop.f32.mrb[0].mxu0
        %1807 = vmatprep.mubr.bf16.mxu0 0
        %1808 = vmatmul.mubr.bf16.gmra.mrb[0].mxu0 %v1673
        %v1809 = vpop.f32.mrb[0].mxu0
        %v1810 = vadd.f32 %v1633, %v1809
        %v1811 = vpop.f32.mrb[0].mxu0
        %v1812 = vpop.f32.mrb[0].mxu0
        %v1813 = vadd.f32 %v1633, %v1812
        %v1814 = vpop.f32.mrb[0].mxu0
        %1815 = vmatprep.mubr.bf16.mxu0 0
        %1816 = vmatmul.mubr.bf16.gmra.mrb[0].mxu0 %v1675
        %v1817 = vpop.f32.mrb[0].mxu0
        %v1818 = vadd.f32 %v1633, %v1817
        %v1819 = vpop.f32.mrb[0].mxu0
        %v1820 = vpop.f32.mrb[0].mxu0
        %v1821 = vadd.f32 %v1633, %v1820
        %v1822 = vpop.f32.mrb[0].mxu0
        %1823 = vmatprep.mubr.bf16.mxu0 0
        %1824 = vmatmul.mubr.bf16.gmra.mrb[0].mxu0 %v1677
        %v1825 = vpop.f32.mrb[0].mxu0
        %v1826 = vadd.f32 %v1633, %v1825
        %v1827 = vpop.f32.mrb[0].mxu0
        %v1828 = vpop.f32.mrb[0].mxu0
        %v1829 = vadd.f32 %v1633, %v1828
        %v1830 = vpop.f32.mrb[0].mxu0
        %1831 = vmatprep.mubr.bf16.mxu0 0
        %1832 = vmatmul.mubr.bf16.gmra.mrb[0].mxu0 %v1679
        %v1833 = vpop.f32.mrb[0].mxu0
        %v1834 = vadd.f32 %v1633, %v1833
        %v1835 = vpop.f32.mrb[0].mxu0
        %v1836 = vpop.f32.mrb[0].mxu0
        %v1837 = vadd.f32 %v1633, %v1836
        %v1838 = vpop.f32.mrb[0].mxu0
        %1839 = vmatprep.mubr.bf16.mxu0 0
        %1840 = vmatmul.mubr.bf16.gmra.mrb[0].mxu0 %v1681
        %v1841 = vpop.f32.mrb[0].mxu0
        %v1842 = vadd.f32 %v1633, %v1841
        %v1843 = vpop.f32.mrb[0].mxu0
        %v1844 = vpop.f32.mrb[0].mxu0
        %v1845 = vadd.f32 %v1633, %v1844
        %v1846 = vpop.f32.mrb[0].mxu0
        %1847 = vdwg.mxu0
        %p1848 = scmp.eq.s32.totalorder %s32, 0
        // Predicated region
        $region49: #{tpu_custom_call.1} parent=47 // pred_check
          %p1849 = pneg %p1848
        $region50: #{tpu_custom_call.1} parent=47 // pred_check_branch
          %1851 = sbr.rel (%p1849) target = $region52
        $region51: #{tpu_custom_call.1} parent=47 // pred_region
          %vm1852 = vcmask 253952
          %1853 = vst.msk [vmem:[%s452] sm:$0x1] %vm1852, 0.0
          %1854 = vst.msk [vmem:[%s458] sm:$0x1] %vm1852, 0.0
        $region52: #{tpu_custom_call.1} parent=47 // pred_fallthru
          _
        %v1855 = vld [vmem:[%s452] sm:$0x1]
        %v1856 = vsel %vm1590, %v1722, 0.0
        %v1857 = vsel %vm1590, %v1725, 0.0
        %v1858 = vadd.f32 %v1856, %v1857
        %v1859 = vsel %vm1590, %v1730, 0.0
        %v1860 = vadd.f32 %v1858, %v1859
        %v1861 = vsel %vm1590, %v1733, 0.0
        %v1862 = vadd.f32 %v1860, %v1861
        %v1863 = vsel %vm1590, %v1738, 0.0
        %v1864 = vadd.f32 %v1862, %v1863
        %v1865 = vsel %vm1590, %v1741, 0.0
        %v1866 = vadd.f32 %v1864, %v1865
        %v1867 = vsel %vm1590, %v1746, 0.0
        %v1868 = vadd.f32 %v1866, %v1867
        %v1869 = vsel %vm1590, %v1749, 0.0
        %v1870 = vadd.f32 %v1868, %v1869
        %v1871 = vsel %vm1590, %v1754, 0.0
        %v1872 = vadd.f32 %v1870, %v1871
        %v1873 = vsel %vm1590, %v1757, 0.0
        %v1874 = vadd.f32 %v1872, %v1873
        %v1875 = vsel %vm1590, %v1762, 0.0
        %v1876 = vadd.f32 %v1874, %v1875
        %v1877 = vsel %vm1590, %v1765, 0.0
        %v1878 = vadd.f32 %v1876, %v1877
        %v1879 = vsel %vm1590, %v1770, 0.0
        %v1880 = vadd.f32 %v1878, %v1879
        %v1881 = vsel %vm1590, %v1773, 0.0
        %v1882 = vadd.f32 %v1880, %v1881
        %v1883 = vsel %vm1590, %v1778, 0.0
        %v1884 = vadd.f32 %v1882, %v1883
        %v1885 = vsel %vm1590, %v1781, 0.0
        %v1886 = vadd.f32 %v1884, %v1885
        %v1887 = vsel %vm1590, %v1786, 0.0
        %v1888 = vadd.f32 %v1886, %v1887
        %v1889 = vsel %vm1590, %v1789, 0.0
        %v1890 = vadd.f32 %v1888, %v1889
        %v1891 = vsel %vm1590, %v1794, 0.0
        %v1892 = vadd.f32 %v1890, %v1891
        %v1893 = vsel %vm1590, %v1797, 0.0
        %v1894 = vadd.f32 %v1892, %v1893
        %v1895 = vsel %vm1590, %v1802, 0.0
        %v1896 = vadd.f32 %v1894, %v1895
        %v1897 = vsel %vm1590, %v1805, 0.0
        %v1898 = vadd.f32 %v1896, %v1897
        %v1899 = vsel %vm1590, %v1810, 0.0
        %v1900 = vadd.f32 %v1898, %v1899
        %v1901 = vsel %vm1590, %v1813, 0.0
        %v1902 = vadd.f32 %v1900, %v1901
        %v1903 = vsel %vm1590, %v1818, 0.0
        %v1904 = vadd.f32 %v1902, %v1903
        %v1905 = vsel %vm1590, %v1821, 0.0
        %v1906 = vadd.f32 %v1904, %v1905
        %v1907 = vsel %vm1590, %v1826, 0.0
        %v1908 = vadd.f32 %v1906, %v1907
        %v1909 = vsel %vm1590, %v1829, 0.0
        %v1910 = vadd.f32 %v1908, %v1909
        %v1911 = vsel %vm1590, %v1834, 0.0
        %v1912 = vadd.f32 %v1910, %v1911
        %v1913 = vsel %vm1590, %v1837, 0.0
        %v1914 = vadd.f32 %v1912, %v1913
        %v1915 = vsel %vm1590, %v1842, 0.0
        %v1916 = vadd.f32 %v1914, %v1915
        %v1917 = vsel %vm1590, %v1845, 0.0
        %v1918 = vadd.f32 %v1916, %v1917
        %v1919 = vrot.slane %v1918, 4
        %v1920 = vadd.f32 %v1918, %v1919
        %v1921 = vrot.slane %v1920, 2
        %v1922 = vadd.f32 %v1920, %v1921
        %v1923 = vrot.slane %v1922, 1
        %v1924 = vadd.f32 %v1922, %v1923
        %v1925 = vadd.f32 %v1855, %v1924
        %vm1926 = vcmask 253952
        %1927 = vst.msk [vmem:[%s452] sm:$0x1] %vm1926, %v1925
        %v1928 = vld [vmem:[%s458] sm:$0x1]
        %v1929 = vmul.f32 %v1722, %v1722
        %v1930 = vmul.f32 %v1725, %v1725
        %v1931 = vmul.f32 %v1730, %v1730
        %v1932 = vmul.f32 %v1733, %v1733
        %v1933 = vmul.f32 %v1738, %v1738
        %v1934 = vmul.f32 %v1741, %v1741
        %v1935 = vmul.f32 %v1746, %v1746
        %v1936 = vmul.f32 %v1749, %v1749
        %v1937 = vmul.f32 %v1754, %v1754
        %v1938 = vmul.f32 %v1757, %v1757
        %v1939 = vmul.f32 %v1762, %v1762
        %v1940 = vmul.f32 %v1765, %v1765
        %v1941 = vmul.f32 %v1770, %v1770
        %v1942 = vmul.f32 %v1773, %v1773
        %v1943 = vmul.f32 %v1778, %v1778
        %v1944 = vmul.f32 %v1781, %v1781
        %v1945 = vmul.f32 %v1786, %v1786
        %v1946 = vmul.f32 %v1789, %v1789
        %v1947 = vmul.f32 %v1794, %v1794
        %v1948 = vmul.f32 %v1797, %v1797
        %v1949 = vmul.f32 %v1802, %v1802
        %v1950 = vmul.f32 %v1805, %v1805
        %v1951 = vmul.f32 %v1810, %v1810
        %v1952 = vmul.f32 %v1813, %v1813
        %v1953 = vmul.f32 %v1818, %v1818
        %v1954 = vmul.f32 %v1821, %v1821
        %v1955 = vmul.f32 %v1826, %v1826
        %v1956 = vmul.f32 %v1829, %v1829
        %v1957 = vmul.f32 %v1834, %v1834
        %v1958 = vmul.f32 %v1837, %v1837
        %v1959 = vmul.f32 %v1842, %v1842
        %v1960 = vmul.f32 %v1845, %v1845
        %v1961 = vsel %vm1590, %v1929, 0.0
        %v1962 = vsel %vm1590, %v1930, 0.0
        %v1963 = vadd.f32 %v1961, %v1962
        %v1964 = vsel %vm1590, %v1931, 0.0
        %v1965 = vadd.f32 %v1963, %v1964
        %v1966 = vsel %vm1590, %v1932, 0.0
        %v1967 = vadd.f32 %v1965, %v1966
        %v1968 = vsel %vm1590, %v1933, 0.0
        %v1969 = vadd.f32 %v1967, %v1968
        %v1970 = vsel %vm1590, %v1934, 0.0
        %v1971 = vadd.f32 %v1969, %v1970
        %v1972 = vsel %vm1590, %v1935, 0.0
        %v1973 = vadd.f32 %v1971, %v1972
        %v1974 = vsel %vm1590, %v1936, 0.0
        %v1975 = vadd.f32 %v1973, %v1974
        %v1976 = vsel %vm1590, %v1937, 0.0
        %v1977 = vadd.f32 %v1975, %v1976
        %v1978 = vsel %vm1590, %v1938, 0.0
        %v1979 = vadd.f32 %v1977, %v1978
        %v1980 = vsel %vm1590, %v1939, 0.0
        %v1981 = vadd.f32 %v1979, %v1980
        %v1982 = vsel %vm1590, %v1940, 0.0
        %v1983 = vadd.f32 %v1981, %v1982
        %v1984 = vsel %vm1590, %v1941, 0.0
        %v1985 = vadd.f32 %v1983, %v1984
        %v1986 = vsel %vm1590, %v1942, 0.0
        %v1987 = vadd.f32 %v1985, %v1986
        %v1988 = vsel %vm1590, %v1943, 0.0
        %v1989 = vadd.f32 %v1987, %v1988
        %v1990 = vsel %vm1590, %v1944, 0.0
        %v1991 = vadd.f32 %v1989, %v1990
        %v1992 = vsel %vm1590, %v1945, 0.0
        %v1993 = vadd.f32 %v1991, %v1992
        %v1994 = vsel %vm1590, %v1946, 0.0
        %v1995 = vadd.f32 %v1993, %v1994
        %v1996 = vsel %vm1590, %v1947, 0.0
        %v1997 = vadd.f32 %v1995, %v1996
        %v1998 = vsel %vm1590, %v1948, 0.0
        %v1999 = vadd.f32 %v1997, %v1998
        %v2000 = vsel %vm1590, %v1949, 0.0
        %v2001 = vadd.f32 %v1999, %v2000
        %v2002 = vsel %vm1590, %v1950, 0.0
        %v2003 = vadd.f32 %v2001, %v2002
        %v2004 = vsel %vm1590, %v1951, 0.0
        %v2005 = vadd.f32 %v2003, %v2004
        %v2006 = vsel %vm1590, %v1952, 0.0
        %v2007 = vadd.f32 %v2005, %v2006
        %v2008 = vsel %vm1590, %v1953, 0.0
        %v2009 = vadd.f32 %v2007, %v2008
        %v2010 = vsel %vm1590, %v1954, 0.0
        %v2011 = vadd.f32 %v2009, %v2010
        %v2012 = vsel %vm1590, %v1955, 0.0
        %v2013 = vadd.f32 %v2011, %v2012
        %v2014 = vsel %vm1590, %v1956, 0.0
        %v2015 = vadd.f32 %v2013, %v2014
        %v2016 = vsel %vm1590, %v1957, 0.0
        %v2017 = vadd.f32 %v2015, %v2016
        %v2018 = vsel %vm1590, %v1958, 0.0
        %v2019 = vadd.f32 %v2017, %v2018
        %v2020 = vsel %vm1590, %v1959, 0.0
        %v2021 = vadd.f32 %v2019, %v2020
        %v2022 = vsel %vm1590, %v1960, 0.0
        %v2023 = vadd.f32 %v2021, %v2022
        %v2024 = vrot.slane %v2023, 4
        %v2025 = vadd.f32 %v2023, %v2024
        %v2026 = vrot.slane %v2025, 2
        %v2027 = vadd.f32 %v2025, %v2026
        %v2028 = vrot.slane %v2027, 1
        %v2029 = vadd.f32 %v2027, %v2028
        %v2030 = vadd.f32 %v1928, %v2029
        %2031 = vst.msk [vmem:[%s458] sm:$0x1] %vm1926, %v2030
        %v2032 = vpack.c.bf16 %v1725, %v1722
        %v2033 = vpack.c.bf16 %v1733, %v1730
        %v2034 = vpack.c.bf16 %v1741, %v1738
        %v2035 = vpack.c.bf16 %v1749, %v1746
        %v2036 = vpack.c.bf16 %v1757, %v1754
        %v2037 = vpack.c.bf16 %v1765, %v1762
        %v2038 = vpack.c.bf16 %v1773, %v1770
        %v2039 = vpack.c.bf16 %v1781, %v1778
        %v2040 = vpack.c.bf16 %v1789, %v1786
        %v2041 = vpack.c.bf16 %v1797, %v1794
        %v2042 = vpack.c.bf16 %v1805, %v1802
        %v2043 = vpack.c.bf16 %v1813, %v1810
        %v2044 = vpack.c.bf16 %v1821, %v1818
        %v2045 = vpack.c.bf16 %v1829, %v1826
        %v2046 = vpack.c.bf16 %v1837, %v1834
        %v2047 = vpack.c.bf16 %v1845, %v1842
        %v2064 = vunpack.c.l.b16 %v2032
        %v2065 = vunpack.c.h.b16 %v2032
        %v2066 = vunpack.c.l.b16 %v2033
        %v2067 = vunpack.c.h.b16 %v2033
        %v2068 = vunpack.c.l.b16 %v2034
        %v2069 = vunpack.c.h.b16 %v2034
        %v2070 = vunpack.c.l.b16 %v2035
        %v2071 = vunpack.c.h.b16 %v2035
        %v2072 = vunpack.c.l.b16 %v2036
        %v2073 = vunpack.c.h.b16 %v2036
        %v2074 = vunpack.c.l.b16 %v2037
        %v2075 = vunpack.c.h.b16 %v2037
        %v2076 = vunpack.c.l.b16 %v2038
        %v2077 = vunpack.c.h.b16 %v2038
        %v2078 = vunpack.c.l.b16 %v2039
        %v2079 = vunpack.c.h.b16 %v2039
        %v2080 = vunpack.c.l.b16 %v2040
        %v2081 = vunpack.c.h.b16 %v2040
        %v2082 = vunpack.c.l.b16 %v2041
        %v2083 = vunpack.c.h.b16 %v2041
        %v2084 = vunpack.c.l.b16 %v2042
        %v2085 = vunpack.c.h.b16 %v2042
        %v2086 = vunpack.c.l.b16 %v2043
        %v2087 = vunpack.c.h.b16 %v2043
        %v2088 = vunpack.c.l.b16 %v2044
        %v2089 = vunpack.c.h.b16 %v2044
        %v2090 = vunpack.c.l.b16 %v2045
        %v2091 = vunpack.c.h.b16 %v2045
        %v2092 = vunpack.c.l.b16 %v2046
        %v2093 = vunpack.c.h.b16 %v2046
        %v2094 = vunpack.c.l.b16 %v2047
        %v2095 = vunpack.c.h.b16 %v2047
        %v2096 = vpack.c.b16 %v2064, %v2064
        %v2097 = vpack.c.b16 %v2065, %v2065
        %v2098 = vpack.c.b16 %v2066, %v2066
        %v2099 = vpack.c.b16 %v2067, %v2067
        %v2100 = vpack.c.b16 %v2068, %v2068
        %v2101 = vpack.c.b16 %v2069, %v2069
        %v2102 = vpack.c.b16 %v2070, %v2070
        %v2103 = vpack.c.b16 %v2071, %v2071
        %v2104 = vpack.c.b16 %v2072, %v2072
        %v2105 = vpack.c.b16 %v2073, %v2073
        %v2106 = vpack.c.b16 %v2074, %v2074
        %v2107 = vpack.c.b16 %v2075, %v2075
        %v2108 = vpack.c.b16 %v2076, %v2076
        %v2109 = vpack.c.b16 %v2077, %v2077
        %v2110 = vpack.c.b16 %v2078, %v2078
        %v2111 = vpack.c.b16 %v2079, %v2079
        %v2112 = vpack.c.b16 %v2080, %v2080
        %v2113 = vpack.c.b16 %v2081, %v2081
        %v2114 = vpack.c.b16 %v2082, %v2082
        %v2115 = vpack.c.b16 %v2083, %v2083
        %v2116 = vpack.c.b16 %v2084, %v2084
        %v2117 = vpack.c.b16 %v2085, %v2085
        %v2118 = vpack.c.b16 %v2086, %v2086
        %v2119 = vpack.c.b16 %v2087, %v2087
        %v2120 = vpack.c.b16 %v2088, %v2088
        %v2121 = vpack.c.b16 %v2089, %v2089
        %v2122 = vpack.c.b16 %v2090, %v2090
        %v2123 = vpack.c.b16 %v2091, %v2091
        %v2124 = vpack.c.b16 %v2092, %v2092
        %v2125 = vpack.c.b16 %v2093, %v2093
        %v2126 = vpack.c.b16 %v2094, %v2094
        %v2127 = vpack.c.b16 %v2095, %v2095
        %vm2160 = vcmask 257024
        %2161 = vst.msk [vmem:[%s446] sm:$0xf] %vm2160, %v2096
        %2162 = vst.msk [vmem:[%s446 + $0x4] sm:$0xf] %vm2160, %v2097
        %2163 = vst.msk [vmem:[%s446 + $0x8] sm:$0xf] %vm2160, %v2098
        %2164 = vst.msk [vmem:[%s446 + $0xc] sm:$0xf] %vm2160, %v2099
        %2165 = vst.msk [vmem:[%s446 + $0x10] sm:$0xf] %vm2160, %v2100
        %2166 = vst.msk [vmem:[%s446 + $0x14] sm:$0xf] %vm2160, %v2101
        %2167 = vst.msk [vmem:[%s446 + $0x18] sm:$0xf] %vm2160, %v2102
        %2168 = vst.msk [vmem:[%s446 + $0x1c] sm:$0xf] %vm2160, %v2103
        %2169 = vst.msk [vmem:[%s446 + $0x20] sm:$0xf] %vm2160, %v2104
        %2170 = vst.msk [vmem:[%s446 + $0x24] sm:$0xf] %vm2160, %v2105
        %2171 = vst.msk [vmem:[%s446 + $0x28] sm:$0xf] %vm2160, %v2106
        %2172 = vst.msk [vmem:[%s446 + $0x2c] sm:$0xf] %vm2160, %v2107
        %2173 = vst.msk [vmem:[%s446 + $0x30] sm:$0xf] %vm2160, %v2108
        %2174 = vst.msk [vmem:[%s446 + $0x34] sm:$0xf] %vm2160, %v2109
        %2175 = vst.msk [vmem:[%s446 + $0x38] sm:$0xf] %vm2160, %v2110
        %2176 = vst.msk [vmem:[%s446 + $0x3c] sm:$0xf] %vm2160, %v2111
        %2177 = vst.msk [vmem:[%s446 + $0x40] sm:$0xf] %vm2160, %v2112
        %2178 = vst.msk [vmem:[%s446 + $0x44] sm:$0xf] %vm2160, %v2113
        %2179 = vst.msk [vmem:[%s446 + $0x48] sm:$0xf] %vm2160, %v2114
        %2180 = vst.msk [vmem:[%s446 + $0x4c] sm:$0xf] %vm2160, %v2115
        %2181 = vst.msk [vmem:[%s446 + $0x50] sm:$0xf] %vm2160, %v2116
        %2182 = vst.msk [vmem:[%s446 + $0x54] sm:$0xf] %vm2160, %v2117
        %2183 = vst.msk [vmem:[%s446 + $0x58] sm:$0xf] %vm2160, %v2118
        %2184 = vst.msk [vmem:[%s446 + $0x5c] sm:$0xf] %vm2160, %v2119
        %2185 = vst.msk [vmem:[%s446 + $0x60] sm:$0xf] %vm2160, %v2120
        %2186 = vst.msk [vmem:[%s446 + $0x64] sm:$0xf] %vm2160, %v2121
        %2187 = vst.msk [vmem:[%s446 + $0x68] sm:$0xf] %vm2160, %v2122
        %2188 = vst.msk [vmem:[%s446 + $0x6c] sm:$0xf] %vm2160, %v2123
        %2189 = vst.msk [vmem:[%s446 + $0x70] sm:$0xf] %vm2160, %v2124
        %2190 = vst.msk [vmem:[%s446 + $0x74] sm:$0xf] %vm2160, %v2125
        %2191 = vst.msk [vmem:[%s446 + $0x78] sm:$0xf] %vm2160, %v2126
        %2192 = vst.msk [vmem:[%s446 + $0x7c] sm:$0xf] %vm2160, %v2127
        %s2193 = sand.u32 %s233, 1
        %s2194 = scalar_lea.sflag [#allocation3], %s2193
        %s2195 = sand.u32 %s233, 1
        %s2196 = smul.addr %s2195, 128
        %s2197 = scalar_lea.vmem [#allocation2], %s2196
        %s2198 = sand.u32 %s27, 1
        %s2199 = scalar_lea.sflag [#allocation5], %s2198
        %s2200 = sand.u32 %s259, 1
        %s2201 = scalar_lea.vmem [#allocation4], %s2200
        %s2202 = sand.u32 %s27, 1
        %s2203 = scalar_lea.sflag [#allocation5], %s2202
        %s2204 = sand.u32 %s285, 1
        %s2205 = scalar_lea.vmem [#allocation6], %s2204
        // Predicated region
        $region53: #{tpu_custom_call.1} parent=47 // pred_check
          %p2206 = pneg %p243
        $region54: #{tpu_custom_call.1} parent=47 // pred_check_branch
          %2208 = sbr.rel (%p2206) target = $region56
        $region55: #{tpu_custom_call.1} parent=47 // pred_region
          %s2209 = smul.u32 16, %s32
          %s2211 = ssub.s32 2048, 2048
          %2212 = vsyncadd %s2194, %s2211
          %s2213 = smul.addr %s2209, 2
          %s2214 = smul.addr %s31, 32
          %s2215 = sadd.s32 %s2213, %s2214
          %s2216 = smul.addr %s2215, 64
          %s2217 = scalar_lea.hbm %s7, %s2216
          %s2218 = sshll.u32 %s2197, 4
          %s2219 = int_to_ptr.vmem [resolvable:$true] %s2218
          %2224 = dma.vmem_to_hbm [thread:$0]  %s2219, 2048, %s2217, %s2194, 64, 64, 4
        $region56: #{tpu_custom_call.1} parent=47 // pred_fallthru
          _
        // Predicated region
        $region57: #{tpu_custom_call.1} parent=47 // pred_check
          %p2225 = pneg %p269
        $region58: #{tpu_custom_call.1} parent=47 // pred_check_branch
          %2227 = sbr.rel (%p2225) target = $region60
        $region59: #{tpu_custom_call.1} parent=47 // pred_region
          %s2229 = ssub.s32 16, 16
          %2230 = vsyncadd %s2199, %s2229
          %s2231 = smul.addr %s31, 16
          %s2232 = scalar_lea.hbm %s8, %s2231
          %s2234 = sshll.u32 %s2201, 4
          %s2235 = int_to_ptr.vmem [resolvable:$true] %s2234
          %2237 = dma.vmem_to_hbm [thread:$0]  %s2235, 16, %s2232, %s2199
        $region60: #{tpu_custom_call.1} parent=47 // pred_fallthru
          _
        // Predicated region
        $region61: #{tpu_custom_call.1} parent=47 // pred_check
          %p2238 = pneg %p295
        $region62: #{tpu_custom_call.1} parent=47 // pred_check_branch
          %2240 = sbr.rel (%p2238) target = $region64
        $region63: #{tpu_custom_call.1} parent=47 // pred_region
          %s2242 = ssub.s32 16, 16
          %2243 = vsyncadd %s2203, %s2242
          %s2244 = smul.addr %s31, 16
          %s2245 = scalar_lea.hbm %s9, %s2244
          %s2247 = sshll.u32 %s2205, 4
          %s2248 = int_to_ptr.vmem [resolvable:$true] %s2247
          %2250 = dma.vmem_to_hbm [thread:$0]  %s2248, 16, %s2245, %s2203
        $region64: #{tpu_custom_call.1} parent=47 // pred_fallthru
          _
      $region48: #{tpu_custom_call.1} parent=5 // pred_fallthru
        _
      %p2251 = scmp.le.s32.totalorder 2, %s22
      // Predicated region
      $region65: #{tpu_custom_call.1} parent=5 // pred_check
        %p2252 = pneg %p2251
      $region66: #{tpu_custom_call.1} parent=5 // pred_check_branch
        %2254 = sbr.rel (%p2252) target = $region68
      $region67: #{tpu_custom_call.1} parent=5 // pred_region
        %s2255 = ssub.s32 %s22, 2
        // Predicated region
        $region69: #{tpu_custom_call.1} parent=67 // pred_check
          %p2256 = pneg %p249
        $region70: #{tpu_custom_call.1} parent=67 // pred_check_branch
          %2258 = sbr.rel (%p2256) target = $region72
        $region71: #{tpu_custom_call.1} parent=67 // pred_region
          %s2259 = sand.u32 %s234, 1
          %s2260 = scalar_lea.sflag [#allocation3], %s2259
          %s2261 = sand.u32 %s234, 1
          %s2262 = smul.addr %s2261, 128
          %s2263 = scalar_lea.vmem [#allocation2], %s2262
          %2264 = dma.done %s2260, 2048
        $region72: #{tpu_custom_call.1} parent=67 // pred_fallthru
          _
        // Predicated region
        $region73: #{tpu_custom_call.1} parent=67 // pred_check
          %p2265 = pneg %p275
        $region74: #{tpu_custom_call.1} parent=67 // pred_check_branch
          %2267 = sbr.rel (%p2265) target = $region76
        $region75: #{tpu_custom_call.1} parent=67 // pred_region
          %s2268 = sand.u32 %s28, 1
          %s2269 = scalar_lea.sflag [#allocation5], %s2268
          %s2270 = sand.u32 %s260, 1
          %s2271 = scalar_lea.vmem [#allocation4], %s2270
          %2272 = dma.done %s2269, 16
        $region76: #{tpu_custom_call.1} parent=67 // pred_fallthru
          _
        // Predicated region
        $region77: #{tpu_custom_call.1} parent=67 // pred_check
          %p2273 = pneg %p301
        $region78: #{tpu_custom_call.1} parent=67 // pred_check_branch
          %2275 = sbr.rel (%p2273) target = $region80
        $region79: #{tpu_custom_call.1} parent=67 // pred_region
          %s2276 = sand.u32 %s28, 1
          %s2277 = scalar_lea.sflag [#allocation5], %s2276
          %s2278 = sand.u32 %s286, 1
          %s2279 = scalar_lea.vmem [#allocation6], %s2278
          %2280 = dma.done %s2277, 16
        $region80: #{tpu_custom_call.1} parent=67 // pred_fallthru
          _
      $region68: #{tpu_custom_call.1} parent=5 // pred_fallthru
        _
    $region6: #{tpu_custom_call.1} parent=1 // loop_footer
      %s26 = sadd.s32 1, %s22
    $region7: #{tpu_custom_call.1} parent=1 // loop_footer_branch
      %21 = sbr.rel target = $region3
    $region8: #{tpu_custom_call.1} parent=1 // loop_exit
      _
    %2281 = vsyncpa [#allocation3], 1
    %s2282 = scalar_lea.sflag [#allocation3], 1
    %2283 = vsyncpa %s2282, 1
    %2284 = vsyncpa [#allocation5], 1
    %s2285 = scalar_lea.sflag [#allocation5], 1
    %2286 = vsyncpa %s2285, 1

</llo_original>
